<compile_context>
chip_gen: v5e
topology: v5e:2x2
jax: 0.10.0
libtpu: 0.0.40
codegen_flags: <defaults>
</compile_context>

<pallas_src>
import functools

import jax
import jax.numpy as jnp
from jax.experimental import pallas as pl
from jax.experimental.pallas import tpu as pltpu

BN_EPS = 1e-5


# ------------------------------ fused kernel --------------------------------

def net_project_kernel(
    p1_ref,      # (2*B*4*Q, 3F) f32 : conv1 im2col, parity-outermost row layout
    convw_ref,   # (2, 3F, F) bf16   : [conv1 w (rows 0:3C used) ; conv2 w]
    cvec_ref,    # (6, F) f32        : [b1; bn1_s; bn1_t; b2; bn2_s; bn2_t]
    wx_ref,      # (3, 4H, 8H) bf16  : per-layer LSTM input-projection W (layer 0: rows 0:2F)
    wh_ref,      # (3, 2H, 8H) bf16  : per-layer LSTM recurrent W
    lvec_ref,    # (4, 8H) f32       : [lstm_b0; lstm_b1; lstm_b2; fc_b (lane-padded)]
    fcw_ref,     # (2H, 8H) bf16     : fc1 weight (column-padded to 8H)
    out_ref,     # (B, 8H) f32       : logits (first num_classes lanes valid)
):
    f32, bf16 = jnp.float32, jnp.bfloat16
    B = out_ref.shape[0]
    F = convw_ref.shape[2]
    H = wh_ref.shape[1] // 2
    H2 = 2 * H
    Q = p1_ref.shape[0] // (8 * B)          # = T = L // 16
    T = Q

    def shift_down(a):
        # rows shifted by +1 with a zero row in front (left zero-padding in time).
        # TODO(synk): pltpu.roll variant skipped on purpose: (Q,F)=(4,8) is a sub-vreg
        # second-minor roll whose lowering is not guaranteed; the concat is tiny and
        # off the serial path.
        return jnp.concatenate([jnp.zeros((1, a.shape[1]), f32), a[:-1, :]], axis=0)

    # --- Conv block 1: Conv1d(C->F,k3,s2,p1) + ReLU + MaxPool(2,2) + BN affine ---
    # p1 rows are (parity, b, r, q): row = ((parity*B + b)*4 + r)*Q + q, pooled time
    # index m = 4q + r, parity selects conv position 2m / 2m+1.  Pool = max of halves.
    half1 = 4 * B * Q
    y1 = jnp.dot(p1_ref[...].astype(bf16), convw_ref[0],
                 preferred_element_type=f32) + cvec_ref[0:1, :]
    y1 = jnp.maximum(y1, 0.0)
    pooled1 = (jnp.maximum(y1[:half1, :], y1[half1:, :]) * cvec_ref[1:2, :]
               + cvec_ref[2:3, :])                      # (B*4*Q, F), row = b*4Q + r*Q + q
    # TODO(synk): dropout after each conv block is identity in eval mode.

    # --- Conv block 2 (its input phases are exactly the r-blocks of pooled1) ----
    even_rows, odd_rows = [], []
    for b in range(B):
        base = 4 * Q * b
        a0 = pooled1[base + 0 * Q: base + 1 * Q, :]
        a1 = pooled1[base + 1 * Q: base + 2 * Q, :]
        a2 = pooled1[base + 2 * Q: base + 3 * Q, :]
        a3 = pooled1[base + 3 * Q: base + 4 * Q, :]
        a3m = shift_down(a3)
        even_rows.append(jnp.concatenate([a3m, a0, a1], axis=1))   # conv positions 2t
        odd_rows.append(jnp.concatenate([a1, a2, a3], axis=1))     # conv positions 2t+1
    patches2 = jnp.concatenate(even_rows + odd_rows, axis=0)       # (2*B*Q, 3F)
    half2 = B * Q
    y2 = jnp.dot(patches2.astype(bf16), convw_ref[1],
                 preferred_element_type=f32) + cvec_ref[3:4, :]
    y2 = jnp.maximum(y2, 0.0)
    pooled2 = (jnp.maximum(y2[:half2, :], y2[half2:, :]) * cvec_ref[4:5, :]
               + cvec_ref[5:6, :])                      # (B*T, F), row = b*T + t

    # --- 3-layer bidirectional LSTM ----------------------------------------------
    # Per layer: ONE matmul precomputes input projections for all T steps and both
    # directions (Zx @ Wx + b); only h @ Wh (K = 2H) stays on the serial path.
    # Gate columns: [i_f,i_b, f_f,f_b, g_f,g_b, o_f,o_b], each H wide.
    xs0 = [jnp.concatenate([pooled2[b * T + t: b * T + t + 1, :] for b in range(B)],
                           axis=0) for t in range(T)]   # T x (B, F), time-major
    hs = None
    for l in range(3):
        I = F if l == 0 else H2
        wx_full = wx_ref[l]                             # (4H, 8H) bf16
        Wx = wx_full[:2 * I, :] if 2 * I < wx_full.shape[0] else wx_full
        Wh = wh_ref[l]                                  # (2H, 8H) bf16
        bg = lvec_ref[l:l + 1, :]                       # (1, 8H) f32
        if l == 0:
            zrows = [jnp.concatenate([xs0[t], xs0[T - 1 - t]], axis=1)
                     for t in range(T)]
        else:
            zrows = [jnp.concatenate([hs[t][:, :H], hs[T - 1 - t][:, H:],
                                      hs[T - 1 - t][:, :H], hs[t][:, H:]], axis=1)
                     for t in range(T)]
        Zx = jnp.concatenate(zrows, axis=0)             # (T*B, 2I)
        Xp = jnp.dot(Zx.astype(bf16), Wx, preferred_element_type=f32) + bg
        h = jnp.zeros((B, H2), f32)
        c = jnp.zeros((B, H2), f32)
        hs = []
        for t in range(T):                              # fully unrolled, T = 4
            g = Xp[t * B:(t + 1) * B, :] + jnp.dot(h.astype(bf16), Wh,
                                                   preferred_element_type=f32)
            sg = jax.nn.sigmoid(g)                      # one EUP pass over (B, 8H)
            th = jnp.tanh(g)                            # one EUP pass over (B, 8H)
            i_g = sg[:, 0 * H2:1 * H2]
            f_g = sg[:, 1 * H2:2 * H2]
            g_g = th[:, 2 * H2:3 * H2]
            o_g = sg[:, 3 * H2:4 * H2]
            c = f_g * c + i_g * g_g
            h = o_g * jnp.tanh(c)
            hs.append(h)                                # [h_fwd(t) | h_bwd(T-1-t)]
        # TODO(synk): inter-layer LSTM dropout is identity in eval mode.

    # --- cat(h[-2], h[-1]) == merged final hidden of the last layer; then fc1 ----
    # (softmax is never applied in forward(), so return logits)
    out_ref[...] = jnp.dot(hs[T - 1].astype(bf16), fcw_ref[...],
                           preferred_element_type=f32) + lvec_ref[3:4, :]


# ------------------------------ wrapper --------------------------------------

@functools.partial(jax.jit, static_argnames=("num_classes",))
def net_project_forward(params, x_ncl, num_classes):
    B, C, L = x_ncl.shape
    assert L % 16 == 0, "two conv(k3,s2,p1)+pool(2,2) blocks need L % 16 == 0"
    Q = L // 16
    K2 = params['convw'].shape[1]           # 3F
    H8 = params['fcw'].shape[1]             # 8H

    # conv1 im2col in XLA: one lane/row-dense slab, rows ordered (parity, b, r, q),
    # lanes = [k0 channels | k1 channels | k2 channels], lane-padded to 3F.
    xc = jnp.transpose(x_ncl, (0, 2, 1)).astype(jnp.float32)     # (B, L, C)
    xp = jnp.pad(xc, ((0, 0), (1, 0), (0, 0)))                   # left pad time -1 -> 0
    pat = jnp.concatenate([xp[:, 0:L:2, :],                      # tap k=0 (t = 2p-1)
                           xp[:, 1:L:2, :],                      # tap k=1 (t = 2p)
                           xp[:, 2:L + 1:2, :]], axis=2)         # tap k=2 (t = 2p+1)
    pat = pat.reshape(B, Q, 4, 2, 3 * C)                         # p = 8q + 2r + parity
    pat = jnp.transpose(pat, (3, 0, 2, 1, 4)).reshape(8 * B * Q, 3 * C)
    patches1 = jnp.pad(pat, ((0, 0), (0, K2 - 3 * C)))           # (2*B*4*Q, 3F)

    vmem = functools.partial(pl.BlockSpec, memory_space=pltpu.MemorySpace.VMEM)
    args = (patches1, params['convw'], params['cvec'], params['lstm_wx'],
            params['lstm_wh'], params['lvec'], params['fcw'])
    out = pl.pallas_call(
        net_project_kernel,
        out_shape=jax.ShapeDtypeStruct((B, H8), jnp.float32),
        in_specs=[vmem() for _ in args],
        out_specs=vmem(),
    )(*args)
    return out[:, :num_classes]


# ------------------------------ parameters -----------------------------------

def init_params(key, num_classes, n_features, numHN, numFilter):
    C, F, H = n_features, numFilter, numHN
    NC = num_classes
    assert C <= F and 2 * F <= 4 * H and NC <= 8 * H
    keys = iter(jax.random.split(key, 40))

    def uni(shape, bound):
        return jax.random.uniform(next(keys), shape, jnp.float32, -bound, bound)

    def conv_to_mat(w):      # (O, Cin, K) -> (K*Cin, O): rows k-outer / c-inner
        O, Ci, K = w.shape
        return jnp.transpose(w, (2, 1, 0)).reshape(K * Ci, O)

    p = {}
    # bn0 (eval, default running stats / affine): y = s0*x + t0 ; fold into conv1.
    s0 = jnp.ones((C,), jnp.float32) / jnp.sqrt(1.0 + BN_EPS)
    t0 = jnp.zeros((C,), jnp.float32)

    fan1 = C * 3
    w1 = uni((F, C, 3), (6.0 / fan1) ** 0.5)              # kaiming_uniform_
    b1 = uni((F,), (1.0 / fan1) ** 0.5)
    w1f = w1 * s0[None, :, None]                          # exact fold (t0 == 0)
    b1f = b1 + jnp.sum(w1 * t0[None, :, None], axis=(1, 2))

    fan2 = F * 3
    w2 = uni((F, F, 3), (6.0 / fan2) ** 0.5)
    b2 = uni((F,), (1.0 / fan2) ** 0.5)

    # Packed conv weights: (2, 3F, F) bf16; conv1 rows 3C..3F stay zero.
    w1m = jnp.zeros((3 * F, F), jnp.float32).at[:3 * C, :].set(conv_to_mat(w1f))
    p['convw'] = jnp.stack([w1m, conv_to_mat(w2)], axis=0).astype(jnp.bfloat16)

    # conv1_bn / conv2_bn eval affine (default init), applied after the pool.
    bn_s = jnp.ones((F,), jnp.float32) / jnp.sqrt(1.0 + BN_EPS)
    bn_t = jnp.zeros((F,), jnp.float32)
    p['cvec'] = jnp.stack([b1f, bn_s, bn_t, b2, bn_s, bn_t], axis=0)   # (6, F)

    # 3-layer bidirectional LSTM, PyTorch default init U(-1/sqrt(H), 1/sqrt(H)).
    # Wx rows = [x_fwd (I) | x_bwd (I)] (row-padded to 4H), Wh rows = [h_fwd | h_bwd],
    # columns = [i_f,i_b, f_f,f_b, g_f,g_b, o_f,o_b] (each H wide).
    bnd = 1.0 / (H ** 0.5)
    wx_all, wh_all, lb_all = [], [], []
    for l in range(3):
        I = F if l == 0 else 2 * H
        Wx = jnp.zeros((4 * H, 8 * H), jnp.float32)       # rows 2I..4H stay zero
        Wh = jnp.zeros((2 * H, 8 * H), jnp.float32)
        bb = jnp.zeros((8 * H,), jnp.float32)
        for d in range(2):                                # 0 = forward, 1 = backward
            wih = uni((4 * H, I), bnd)
            whh = uni((4 * H, H), bnd)
            bih = uni((4 * H,), bnd)
            bhh = uni((4 * H,), bnd)
            wihT, whhT, bsum = wih.T, whh.T, bih + bhh
            for gi in range(4):                           # gate order i, f, g, o
                col = slice((2 * gi + d) * H, (2 * gi + d + 1) * H)
                src = slice(gi * H, (gi + 1) * H)
                Wx = Wx.at[d * I:(d + 1) * I, col].set(wihT[:, src])
                Wh = Wh.at[d * H:(d + 1) * H, col].set(whhT[:, src])
                bb = bb.at[col].set(bsum[src])
        wx_all.append(Wx); wh_all.append(Wh); lb_all.append(bb)
    p['lstm_wx'] = jnp.stack(wx_all, axis=0).astype(jnp.bfloat16)      # (3, 4H, 8H)
    p['lstm_wh'] = jnp.stack(wh_all, axis=0).astype(jnp.bfloat16)      # (3, 2H, 8H)

    # fc1: xavier_uniform weight (stored transposed, column-padded to 8H), default bias.
    bnd_fc = (6.0 / (2 * H + NC)) ** 0.5
    fcw = jnp.zeros((2 * H, 8 * H), jnp.float32).at[:, :NC].set(uni((2 * H, NC), bnd_fc))
    p['fcw'] = fcw.astype(jnp.bfloat16)
    fcb = jnp.zeros((8 * H,), jnp.float32).at[:NC].set(uni((NC,), 1.0 / (2 * H) ** 0.5))
    p['lvec'] = jnp.stack(lb_all + [fcb], axis=0)                      # (4, 8H)
    return p


if __name__ == "__main__":
    num_classes, n_features, numHN, numFilter, dropOutRate = 3, 4, 16, 8, 0.5
    B, L = 2, 64   # x: (B, n_features, L) NCL, like the PyTorch module

    key = jax.random.PRNGKey(0)
    kx, kp = jax.random.split(key)
    x = jax.random.normal(kx, (B, n_features, L), jnp.float32)
    params = init_params(kp, num_classes, n_features, numHN, numFilter)

    out = net_project_forward(params, x, num_classes=num_classes)
    jax.block_until_ready(out)
    assert out.shape == (B, num_classes) and out.dtype == jnp.float32
    print("KERNEL_OK")
</pallas_src>

<mosaic_0001>
module attributes {stable_mosaic.version = 11 : i64} {
  func.func @net_project_kernel(%arg0: memref<64x24xf32, #tpu.memory_space<vmem>>, %arg1: memref<2x24x8xbf16, #tpu.memory_space<vmem>>, %arg2: memref<6x8xf32, #tpu.memory_space<vmem>>, %arg3: memref<3x64x128xbf16, #tpu.memory_space<vmem>>, %arg4: memref<3x32x128xbf16, #tpu.memory_space<vmem>>, %arg5: memref<4x128xf32, #tpu.memory_space<vmem>>, %arg6: memref<32x128xbf16, #tpu.memory_space<vmem>>, %arg7: memref<2x128xf32, #tpu.memory_space<vmem>>) attributes {dimension_semantics = [], scalar_prefetch = 0 : i64, scratch_operands = 0 : i64, tpu.core_type = #tpu.core_type<tc>} {
    %c0 = arith.constant 0 : index
    %c0_0 = arith.constant 0 : index
    %0 = vector.load %arg0[%c0, %c0_0] : memref<64x24xf32, #tpu.memory_space<vmem>>, vector<64x24xf32>
    %1 = arith.truncf %0 : vector<64x24xf32> to vector<64x24xbf16>
    %c0_1 = arith.constant 0 : index
    %c0_2 = arith.constant 0 : index
    %c0_3 = arith.constant 0 : index
    %2 = vector.load %arg1[%c0_1, %c0_2, %c0_3] : memref<2x24x8xbf16, #tpu.memory_space<vmem>>, vector<1x24x8xbf16>
    %3 = vector.shape_cast %2 : vector<1x24x8xbf16> to vector<24x8xbf16>
    %cst = arith.constant dense<0.000000e+00> : vector<64x8xf32>
    %4 = tpu.matmul %1, %3, %cst {dimension_numbers = #tpu.dot_dimension_numbers<[1], [0], [0], [1], [0, 0, 1, 1], [], []>} : vector<64x24xbf16>, vector<24x8xbf16>, vector<64x8xf32> -> vector<64x8xf32>
    %c0_4 = arith.constant 0 : index
    %c0_5 = arith.constant 0 : index
    %5 = vector.load %arg2[%c0_4, %c0_5] : memref<6x8xf32, #tpu.memory_space<vmem>>, vector<1x8xf32>
    %6 = vector.broadcast %5 : vector<1x8xf32> to vector<64x8xf32>
    %7 = arith.addf %4, %6 : vector<64x8xf32>
    %cst_6 = arith.constant 0.000000e+00 : f32
    %8 = vector.broadcast %cst_6 : f32 to vector<64x8xf32>
    %9 = arith.maximumf %7, %8 : vector<64x8xf32>
    %10 = vector.extract_strided_slice %9 {offsets = [0, 0], sizes = [32, 8], strides = [1, 1]} : vector<64x8xf32> to vector<32x8xf32>
    %11 = vector.extract_strided_slice %9 {offsets = [32, 0], sizes = [32, 8], strides = [1, 1]} : vector<64x8xf32> to vector<32x8xf32>
    %12 = arith.maximumf %10, %11 : vector<32x8xf32>
    %c1 = arith.constant 1 : index
    %c0_7 = arith.constant 0 : index
    %13 = vector.load %arg2[%c1, %c0_7] : memref<6x8xf32, #tpu.memory_space<vmem>>, vector<1x8xf32>
    %14 = vector.broadcast %13 : vector<1x8xf32> to vector<32x8xf32>
    %15 = arith.mulf %12, %14 : vector<32x8xf32>
    %c2 = arith.constant 2 : index
    %c0_8 = arith.constant 0 : index
    %16 = vector.load %arg2[%c2, %c0_8] : memref<6x8xf32, #tpu.memory_space<vmem>>, vector<1x8xf32>
    %17 = vector.broadcast %16 : vector<1x8xf32> to vector<32x8xf32>
    %18 = arith.addf %15, %17 : vector<32x8xf32>
    %19 = vector.extract_strided_slice %18 {offsets = [0, 0], sizes = [4, 8], strides = [1, 1]} : vector<32x8xf32> to vector<4x8xf32>
    %20 = vector.extract_strided_slice %18 {offsets = [4, 0], sizes = [4, 8], strides = [1, 1]} : vector<32x8xf32> to vector<4x8xf32>
    %21 = vector.extract_strided_slice %18 {offsets = [8, 0], sizes = [4, 8], strides = [1, 1]} : vector<32x8xf32> to vector<4x8xf32>
    %22 = vector.extract_strided_slice %18 {offsets = [12, 0], sizes = [4, 8], strides = [1, 1]} : vector<32x8xf32> to vector<4x8xf32>
    %cst_9 = arith.constant 0.000000e+00 : f32
    %23 = vector.broadcast %cst_9 : f32 to vector<1x8xf32>
    %24 = vector.extract_strided_slice %22 {offsets = [0, 0], sizes = [3, 8], strides = [1, 1]} : vector<4x8xf32> to vector<3x8xf32>
    %25 = tpu.concatenate %23, %24 in 0 : vector<1x8xf32>, vector<3x8xf32> -> vector<4x8xf32>
    %26 = tpu.concatenate %25, %19, %20 in 1 : vector<4x8xf32>, vector<4x8xf32>, vector<4x8xf32> -> vector<4x24xf32>
    %27 = tpu.concatenate %20, %21, %22 in 1 : vector<4x8xf32>, vector<4x8xf32>, vector<4x8xf32> -> vector<4x24xf32>
    %28 = vector.extract_strided_slice %18 {offsets = [16, 0], sizes = [4, 8], strides = [1, 1]} : vector<32x8xf32> to vector<4x8xf32>
    %29 = vector.extract_strided_slice %18 {offsets = [20, 0], sizes = [4, 8], strides = [1, 1]} : vector<32x8xf32> to vector<4x8xf32>
    %30 = vector.extract_strided_slice %18 {offsets = [24, 0], sizes = [4, 8], strides = [1, 1]} : vector<32x8xf32> to vector<4x8xf32>
    %31 = vector.extract_strided_slice %18 {offsets = [28, 0], sizes = [4, 8], strides = [1, 1]} : vector<32x8xf32> to vector<4x8xf32>
    %cst_10 = arith.constant 0.000000e+00 : f32
    %32 = vector.broadcast %cst_10 : f32 to vector<1x8xf32>
    %33 = vector.extract_strided_slice %31 {offsets = [0, 0], sizes = [3, 8], strides = [1, 1]} : vector<4x8xf32> to vector<3x8xf32>
    %34 = tpu.concatenate %32, %33 in 0 : vector<1x8xf32>, vector<3x8xf32> -> vector<4x8xf32>
    %35 = tpu.concatenate %34, %28, %29 in 1 : vector<4x8xf32>, vector<4x8xf32>, vector<4x8xf32> -> vector<4x24xf32>
    %36 = tpu.concatenate %29, %30, %31 in 1 : vector<4x8xf32>, vector<4x8xf32>, vector<4x8xf32> -> vector<4x24xf32>
    %37 = tpu.concatenate %26, %35, %27, %36 in 0 : vector<4x24xf32>, vector<4x24xf32>, vector<4x24xf32>, vector<4x24xf32> -> vector<16x24xf32>
    %38 = arith.truncf %37 : vector<16x24xf32> to vector<16x24xbf16>
    %c1_11 = arith.constant 1 : index
    %c0_12 = arith.constant 0 : index
    %c0_13 = arith.constant 0 : index
    %39 = vector.load %arg1[%c1_11, %c0_12, %c0_13] : memref<2x24x8xbf16, #tpu.memory_space<vmem>>, vector<1x24x8xbf16>
    %40 = vector.shape_cast %39 : vector<1x24x8xbf16> to vector<24x8xbf16>
    %cst_14 = arith.constant dense<0.000000e+00> : vector<16x8xf32>
    %41 = tpu.matmul %38, %40, %cst_14 {dimension_numbers = #tpu.dot_dimension_numbers<[1], [0], [0], [1], [0, 0, 1, 1], [], []>} : vector<16x24xbf16>, vector<24x8xbf16>, vector<16x8xf32> -> vector<16x8xf32>
    %c3 = arith.constant 3 : index
    %c0_15 = arith.constant 0 : index
    %42 = vector.load %arg2[%c3, %c0_15] : memref<6x8xf32, #tpu.memory_space<vmem>>, vector<1x8xf32>
    %43 = vector.broadcast %42 : vector<1x8xf32> to vector<16x8xf32>
    %44 = arith.addf %41, %43 : vector<16x8xf32>
    %cst_16 = arith.constant 0.000000e+00 : f32
    %45 = vector.broadcast %cst_16 : f32 to vector<16x8xf32>
    %46 = arith.maximumf %44, %45 : vector<16x8xf32>
    %47 = vector.extract_strided_slice %46 {offsets = [0, 0], sizes = [8, 8], strides = [1, 1]} : vector<16x8xf32> to vector<8x8xf32>
    %48 = vector.extract_strided_slice %46 {offsets = [8, 0], sizes = [8, 8], strides = [1, 1]} : vector<16x8xf32> to vector<8x8xf32>
    %49 = arith.maximumf %47, %48 : vector<8x8xf32>
    %c4 = arith.constant 4 : index
    %c0_17 = arith.constant 0 : index
    %50 = vector.load %arg2[%c4, %c0_17] : memref<6x8xf32, #tpu.memory_space<vmem>>, vector<1x8xf32>
    %51 = vector.broadcast %50 : vector<1x8xf32> to vector<8x8xf32>
    %52 = arith.mulf %49, %51 : vector<8x8xf32>
    %c5 = arith.constant 5 : index
    %c0_18 = arith.constant 0 : index
    %53 = vector.load %arg2[%c5, %c0_18] : memref<6x8xf32, #tpu.memory_space<vmem>>, vector<1x8xf32>
    %54 = vector.broadcast %53 : vector<1x8xf32> to vector<8x8xf32>
    %55 = arith.addf %52, %54 : vector<8x8xf32>
    %56 = vector.extract_strided_slice %55 {offsets = [0, 0], sizes = [1, 8], strides = [1, 1]} : vector<8x8xf32> to vector<1x8xf32>
    %57 = vector.extract_strided_slice %55 {offsets = [4, 0], sizes = [1, 8], strides = [1, 1]} : vector<8x8xf32> to vector<1x8xf32>
    %58 = tpu.concatenate %56, %57 in 0 : vector<1x8xf32>, vector<1x8xf32> -> vector<2x8xf32>
    %59 = vector.extract_strided_slice %55 {offsets = [1, 0], sizes = [1, 8], strides = [1, 1]} : vector<8x8xf32> to vector<1x8xf32>
    %60 = vector.extract_strided_slice %55 {offsets = [5, 0], sizes = [1, 8], strides = [1, 1]} : vector<8x8xf32> to vector<1x8xf32>
    %61 = tpu.concatenate %59, %60 in 0 : vector<1x8xf32>, vector<1x8xf32> -> vector<2x8xf32>
    %62 = vector.extract_strided_slice %55 {offsets = [2, 0], sizes = [1, 8], strides = [1, 1]} : vector<8x8xf32> to vector<1x8xf32>
    %63 = vector.extract_strided_slice %55 {offsets = [6, 0], sizes = [1, 8], strides = [1, 1]} : vector<8x8xf32> to vector<1x8xf32>
    %64 = tpu.concatenate %62, %63 in 0 : vector<1x8xf32>, vector<1x8xf32> -> vector<2x8xf32>
    %65 = vector.extract_strided_slice %55 {offsets = [3, 0], sizes = [1, 8], strides = [1, 1]} : vector<8x8xf32> to vector<1x8xf32>
    %66 = vector.extract_strided_slice %55 {offsets = [7, 0], sizes = [1, 8], strides = [1, 1]} : vector<8x8xf32> to vector<1x8xf32>
    %67 = tpu.concatenate %65, %66 in 0 : vector<1x8xf32>, vector<1x8xf32> -> vector<2x8xf32>
    %c0_19 = arith.constant 0 : index
    %c0_20 = arith.constant 0 : index
    %c0_21 = arith.constant 0 : index
    %68 = vector.load %arg3[%c0_19, %c0_20, %c0_21] : memref<3x64x128xbf16, #tpu.memory_space<vmem>>, vector<1x64x128xbf16>
    %69 = vector.shape_cast %68 : vector<1x64x128xbf16> to vector<64x128xbf16>
    %70 = vector.extract_strided_slice %69 {offsets = [0, 0], sizes = [16, 128], strides = [1, 1]} : vector<64x128xbf16> to vector<16x128xbf16>
    %c0_22 = arith.constant 0 : index
    %c0_23 = arith.constant 0 : index
    %c0_24 = arith.constant 0 : index
    %71 = vector.load %arg4[%c0_22, %c0_23, %c0_24] : memref<3x32x128xbf16, #tpu.memory_space<vmem>>, vector<1x32x128xbf16>
    %72 = vector.shape_cast %71 : vector<1x32x128xbf16> to vector<32x128xbf16>
    %c0_25 = arith.constant 0 : index
    %c0_26 = arith.constant 0 : index
    %73 = vector.load %arg5[%c0_25, %c0_26] : memref<4x128xf32, #tpu.memory_space<vmem>>, vector<1x128xf32>
    %74 = tpu.concatenate %58, %67 in 1 : vector<2x8xf32>, vector<2x8xf32> -> vector<2x16xf32>
    %75 = tpu.concatenate %61, %64 in 1 : vector<2x8xf32>, vector<2x8xf32> -> vector<2x16xf32>
    %76 = tpu.concatenate %64, %61 in 1 : vector<2x8xf32>, vector<2x8xf32> -> vector<2x16xf32>
    %77 = tpu.concatenate %67, %58 in 1 : vector<2x8xf32>, vector<2x8xf32> -> vector<2x16xf32>
    %78 = tpu.concatenate %74, %75, %76, %77 in 0 : vector<2x16xf32>, vector<2x16xf32>, vector<2x16xf32>, vector<2x16xf32> -> vector<8x16xf32>
    %79 = arith.truncf %78 : vector<8x16xf32> to vector<8x16xbf16>
    %cst_27 = arith.constant dense<0.000000e+00> : vector<8x128xf32>
    %80 = tpu.matmul %79, %70, %cst_27 {dimension_numbers = #tpu.dot_dimension_numbers<[1], [0], [0], [1], [0, 0, 1, 1], [], []>} : vector<8x16xbf16>, vector<16x128xbf16>, vector<8x128xf32> -> vector<8x128xf32>
    %81 = vector.broadcast %73 : vector<1x128xf32> to vector<8x128xf32>
    %82 = arith.addf %80, %81 : vector<8x128xf32>
    %cst_28 = arith.constant 0.000000e+00 : f32
    %83 = vector.broadcast %cst_28 : f32 to vector<2x32xf32>
    %cst_29 = arith.constant 0.000000e+00 : f32
    %84 = vector.broadcast %cst_29 : f32 to vector<2x32xf32>
    %85 = vector.extract_strided_slice %82 {offsets = [0, 0], sizes = [2, 128], strides = [1, 1]} : vector<8x128xf32> to vector<2x128xf32>
    %86 = arith.truncf %83 : vector<2x32xf32> to vector<2x32xbf16>
    %cst_30 = arith.constant dense<0.000000e+00> : vector<2x128xf32>
    %87 = tpu.matmul %86, %72, %cst_30 {dimension_numbers = #tpu.dot_dimension_numbers<[1], [0], [0], [1], [0, 0, 1, 1], [], []>} : vector<2x32xbf16>, vector<32x128xbf16>, vector<2x128xf32> -> vector<2x128xf32>
    %88 = arith.addf %85, %87 : vector<2x128xf32>
    %89 = arith.negf %88 : vector<2x128xf32>
    %90 = math.exp %89 : vector<2x128xf32>
    %cst_31 = arith.constant 1.000000e+00 : f32
    %91 = vector.broadcast %cst_31 : f32 to vector<2x128xf32>
    %92 = arith.addf %91, %90 : vector<2x128xf32>
    %93 = arith.divf %91, %92 : vector<2x128xf32>
    %94 = math.tanh %88 : vector<2x128xf32>
    %95 = vector.extract_strided_slice %93 {offsets = [0, 0], sizes = [2, 32], strides = [1, 1]} : vector<2x128xf32> to vector<2x32xf32>
    %96 = vector.extract_strided_slice %93 {offsets = [0, 32], sizes = [2, 32], strides = [1, 1]} : vector<2x128xf32> to vector<2x32xf32>
    %97 = vector.extract_strided_slice %94 {offsets = [0, 64], sizes = [2, 32], strides = [1, 1]} : vector<2x128xf32> to vector<2x32xf32>
    %98 = vector.extract_strided_slice %93 {offsets = [0, 96], sizes = [2, 32], strides = [1, 1]} : vector<2x128xf32> to vector<2x32xf32>
    %99 = arith.mulf %96, %84 : vector<2x32xf32>
    %100 = arith.mulf %95, %97 : vector<2x32xf32>
    %101 = arith.addf %99, %100 : vector<2x32xf32>
    %102 = math.tanh %101 : vector<2x32xf32>
    %103 = arith.mulf %98, %102 : vector<2x32xf32>
    %104 = vector.extract_strided_slice %82 {offsets = [2, 0], sizes = [2, 128], strides = [1, 1]} : vector<8x128xf32> to vector<2x128xf32>
    %105 = arith.truncf %103 : vector<2x32xf32> to vector<2x32xbf16>
    %cst_32 = arith.constant dense<0.000000e+00> : vector<2x128xf32>
    %106 = tpu.matmul %105, %72, %cst_32 {dimension_numbers = #tpu.dot_dimension_numbers<[1], [0], [0], [1], [0, 0, 1, 1], [], []>} : vector<2x32xbf16>, vector<32x128xbf16>, vector<2x128xf32> -> vector<2x128xf32>
    %107 = arith.addf %104, %106 : vector<2x128xf32>
    %108 = arith.negf %107 : vector<2x128xf32>
    %109 = math.exp %108 : vector<2x128xf32>
    %cst_33 = arith.constant 1.000000e+00 : f32
    %110 = vector.broadcast %cst_33 : f32 to vector<2x128xf32>
    %111 = arith.addf %110, %109 : vector<2x128xf32>
    %112 = arith.divf %110, %111 : vector<2x128xf32>
    %113 = math.tanh %107 : vector<2x128xf32>
    %114 = vector.extract_strided_slice %112 {offsets = [0, 0], sizes = [2, 32], strides = [1, 1]} : vector<2x128xf32> to vector<2x32xf32>
    %115 = vector.extract_strided_slice %112 {offsets = [0, 32], sizes = [2, 32], strides = [1, 1]} : vector<2x128xf32> to vector<2x32xf32>
    %116 = vector.extract_strided_slice %113 {offsets = [0, 64], sizes = [2, 32], strides = [1, 1]} : vector<2x128xf32> to vector<2x32xf32>
    %117 = vector.extract_strided_slice %112 {offsets = [0, 96], sizes = [2, 32], strides = [1, 1]} : vector<2x128xf32> to vector<2x32xf32>
    %118 = arith.mulf %115, %101 : vector<2x32xf32>
    %119 = arith.mulf %114, %116 : vector<2x32xf32>
    %120 = arith.addf %118, %119 : vector<2x32xf32>
    %121 = math.tanh %120 : vector<2x32xf32>
    %122 = arith.mulf %117, %121 : vector<2x32xf32>
    %123 = vector.extract_strided_slice %82 {offsets = [4, 0], sizes = [2, 128], strides = [1, 1]} : vector<8x128xf32> to vector<2x128xf32>
    %124 = arith.truncf %122 : vector<2x32xf32> to vector<2x32xbf16>
    %cst_34 = arith.constant dense<0.000000e+00> : vector<2x128xf32>
    %125 = tpu.matmul %124, %72, %cst_34 {dimension_numbers = #tpu.dot_dimension_numbers<[1], [0], [0], [1], [0, 0, 1, 1], [], []>} : vector<2x32xbf16>, vector<32x128xbf16>, vector<2x128xf32> -> vector<2x128xf32>
    %126 = arith.addf %123, %125 : vector<2x128xf32>
    %127 = arith.negf %126 : vector<2x128xf32>
    %128 = math.exp %127 : vector<2x128xf32>
    %cst_35 = arith.constant 1.000000e+00 : f32
    %129 = vector.broadcast %cst_35 : f32 to vector<2x128xf32>
    %130 = arith.addf %129, %128 : vector<2x128xf32>
    %131 = arith.divf %129, %130 : vector<2x128xf32>
    %132 = math.tanh %126 : vector<2x128xf32>
    %133 = vector.extract_strided_slice %131 {offsets = [0, 0], sizes = [2, 32], strides = [1, 1]} : vector<2x128xf32> to vector<2x32xf32>
    %134 = vector.extract_strided_slice %131 {offsets = [0, 32], sizes = [2, 32], strides = [1, 1]} : vector<2x128xf32> to vector<2x32xf32>
    %135 = vector.extract_strided_slice %132 {offsets = [0, 64], sizes = [2, 32], strides = [1, 1]} : vector<2x128xf32> to vector<2x32xf32>
    %136 = vector.extract_strided_slice %131 {offsets = [0, 96], sizes = [2, 32], strides = [1, 1]} : vector<2x128xf32> to vector<2x32xf32>
    %137 = arith.mulf %134, %120 : vector<2x32xf32>
    %138 = arith.mulf %133, %135 : vector<2x32xf32>
    %139 = arith.addf %137, %138 : vector<2x32xf32>
    %140 = math.tanh %139 : vector<2x32xf32>
    %141 = arith.mulf %136, %140 : vector<2x32xf32>
    %142 = vector.extract_strided_slice %82 {offsets = [6, 0], sizes = [2, 128], strides = [1, 1]} : vector<8x128xf32> to vector<2x128xf32>
    %143 = arith.truncf %141 : vector<2x32xf32> to vector<2x32xbf16>
    %cst_36 = arith.constant dense<0.000000e+00> : vector<2x128xf32>
    %144 = tpu.matmul %143, %72, %cst_36 {dimension_numbers = #tpu.dot_dimension_numbers<[1], [0], [0], [1], [0, 0, 1, 1], [], []>} : vector<2x32xbf16>, vector<32x128xbf16>, vector<2x128xf32> -> vector<2x128xf32>
    %145 = arith.addf %142, %144 : vector<2x128xf32>
    %146 = arith.negf %145 : vector<2x128xf32>
    %147 = math.exp %146 : vector<2x128xf32>
    %cst_37 = arith.constant 1.000000e+00 : f32
    %148 = vector.broadcast %cst_37 : f32 to vector<2x128xf32>
    %149 = arith.addf %148, %147 : vector<2x128xf32>
    %150 = arith.divf %148, %149 : vector<2x128xf32>
    %151 = math.tanh %145 : vector<2x128xf32>
    %152 = vector.extract_strided_slice %150 {offsets = [0, 0], sizes = [2, 32], strides = [1, 1]} : vector<2x128xf32> to vector<2x32xf32>
    %153 = vector.extract_strided_slice %150 {offsets = [0, 32], sizes = [2, 32], strides = [1, 1]} : vector<2x128xf32> to vector<2x32xf32>
    %154 = vector.extract_strided_slice %151 {offsets = [0, 64], sizes = [2, 32], strides = [1, 1]} : vector<2x128xf32> to vector<2x32xf32>
    %155 = vector.extract_strided_slice %150 {offsets = [0, 96], sizes = [2, 32], strides = [1, 1]} : vector<2x128xf32> to vector<2x32xf32>
    %156 = arith.mulf %153, %139 : vector<2x32xf32>
    %157 = arith.mulf %152, %154 : vector<2x32xf32>
    %158 = arith.addf %156, %157 : vector<2x32xf32>
    %159 = math.tanh %158 : vector<2x32xf32>
    %160 = arith.mulf %155, %159 : vector<2x32xf32>
    %c1_38 = arith.constant 1 : index
    %c0_39 = arith.constant 0 : index
    %c0_40 = arith.constant 0 : index
    %161 = vector.load %arg3[%c1_38, %c0_39, %c0_40] : memref<3x64x128xbf16, #tpu.memory_space<vmem>>, vector<1x64x128xbf16>
    %162 = vector.shape_cast %161 : vector<1x64x128xbf16> to vector<64x128xbf16>
    %c1_41 = arith.constant 1 : index
    %c0_42 = arith.constant 0 : index
    %c0_43 = arith.constant 0 : index
    %163 = vector.load %arg4[%c1_41, %c0_42, %c0_43] : memref<3x32x128xbf16, #tpu.memory_space<vmem>>, vector<1x32x128xbf16>
    %164 = vector.shape_cast %163 : vector<1x32x128xbf16> to vector<32x128xbf16>
    %c1_44 = arith.constant 1 : index
    %c0_45 = arith.constant 0 : index
    %165 = vector.load %arg5[%c1_44, %c0_45] : memref<4x128xf32, #tpu.memory_space<vmem>>, vector<1x128xf32>
    %166 = vector.extract_strided_slice %103 {offsets = [0, 0], sizes = [2, 16], strides = [1, 1]} : vector<2x32xf32> to vector<2x16xf32>
    %167 = vector.extract_strided_slice %160 {offsets = [0, 16], sizes = [2, 16], strides = [1, 1]} : vector<2x32xf32> to vector<2x16xf32>
    %168 = vector.extract_strided_slice %160 {offsets = [0, 0], sizes = [2, 16], strides = [1, 1]} : vector<2x32xf32> to vector<2x16xf32>
    %169 = vector.extract_strided_slice %103 {offsets = [0, 16], sizes = [2, 16], strides = [1, 1]} : vector<2x32xf32> to vector<2x16xf32>
    %170 = tpu.concatenate %166, %167, %168, %169 in 1 : vector<2x16xf32>, vector<2x16xf32>, vector<2x16xf32>, vector<2x16xf32> -> vector<2x64xf32>
    %171 = vector.extract_strided_slice %122 {offsets = [0, 0], sizes = [2, 16], strides = [1, 1]} : vector<2x32xf32> to vector<2x16xf32>
    %172 = vector.extract_strided_slice %141 {offsets = [0, 16], sizes = [2, 16], strides = [1, 1]} : vector<2x32xf32> to vector<2x16xf32>
    %173 = vector.extract_strided_slice %141 {offsets = [0, 0], sizes = [2, 16], strides = [1, 1]} : vector<2x32xf32> to vector<2x16xf32>
    %174 = vector.extract_strided_slice %122 {offsets = [0, 16], sizes = [2, 16], strides = [1, 1]} : vector<2x32xf32> to vector<2x16xf32>
    %175 = tpu.concatenate %171, %172, %173, %174 in 1 : vector<2x16xf32>, vector<2x16xf32>, vector<2x16xf32>, vector<2x16xf32> -> vector<2x64xf32>
    %176 = vector.extract_strided_slice %141 {offsets = [0, 0], sizes = [2, 16], strides = [1, 1]} : vector<2x32xf32> to vector<2x16xf32>
    %177 = vector.extract_strided_slice %122 {offsets = [0, 16], sizes = [2, 16], strides = [1, 1]} : vector<2x32xf32> to vector<2x16xf32>
    %178 = vector.extract_strided_slice %122 {offsets = [0, 0], sizes = [2, 16], strides = [1, 1]} : vector<2x32xf32> to vector<2x16xf32>
    %179 = vector.extract_strided_slice %141 {offsets = [0, 16], sizes = [2, 16], strides = [1, 1]} : vector<2x32xf32> to vector<2x16xf32>
    %180 = tpu.concatenate %176, %177, %178, %179 in 1 : vector<2x16xf32>, vector<2x16xf32>, vector<2x16xf32>, vector<2x16xf32> -> vector<2x64xf32>
    %181 = vector.extract_strided_slice %160 {offsets = [0, 0], sizes = [2, 16], strides = [1, 1]} : vector<2x32xf32> to vector<2x16xf32>
    %182 = vector.extract_strided_slice %103 {offsets = [0, 16], sizes = [2, 16], strides = [1, 1]} : vector<2x32xf32> to vector<2x16xf32>
    %183 = vector.extract_strided_slice %103 {offsets = [0, 0], sizes = [2, 16], strides = [1, 1]} : vector<2x32xf32> to vector<2x16xf32>
    %184 = vector.extract_strided_slice %160 {offsets = [0, 16], sizes = [2, 16], strides = [1, 1]} : vector<2x32xf32> to vector<2x16xf32>
    %185 = tpu.concatenate %181, %182, %183, %184 in 1 : vector<2x16xf32>, vector<2x16xf32>, vector<2x16xf32>, vector<2x16xf32> -> vector<2x64xf32>
    %186 = tpu.concatenate %170, %175, %180, %185 in 0 : vector<2x64xf32>, vector<2x64xf32>, vector<2x64xf32>, vector<2x64xf32> -> vector<8x64xf32>
    %187 = arith.truncf %186 : vector<8x64xf32> to vector<8x64xbf16>
    %cst_46 = arith.constant dense<0.000000e+00> : vector<8x128xf32>
    %188 = tpu.matmul %187, %162, %cst_46 {dimension_numbers = #tpu.dot_dimension_numbers<[1], [0], [0], [1], [0, 0, 1, 1], [], []>} : vector<8x64xbf16>, vector<64x128xbf16>, vector<8x128xf32> -> vector<8x128xf32>
    %189 = vector.broadcast %165 : vector<1x128xf32> to vector<8x128xf32>
    %190 = arith.addf %188, %189 : vector<8x128xf32>
    %cst_47 = arith.constant 0.000000e+00 : f32
    %191 = vector.broadcast %cst_47 : f32 to vector<2x32xf32>
    %cst_48 = arith.constant 0.000000e+00 : f32
    %192 = vector.broadcast %cst_48 : f32 to vector<2x32xf32>
    %193 = vector.extract_strided_slice %190 {offsets = [0, 0], sizes = [2, 128], strides = [1, 1]} : vector<8x128xf32> to vector<2x128xf32>
    %194 = arith.truncf %191 : vector<2x32xf32> to vector<2x32xbf16>
    %cst_49 = arith.constant dense<0.000000e+00> : vector<2x128xf32>
    %195 = tpu.matmul %194, %164, %cst_49 {dimension_numbers = #tpu.dot_dimension_numbers<[1], [0], [0], [1], [0, 0, 1, 1], [], []>} : vector<2x32xbf16>, vector<32x128xbf16>, vector<2x128xf32> -> vector<2x128xf32>
    %196 = arith.addf %193, %195 : vector<2x128xf32>
    %197 = arith.negf %196 : vector<2x128xf32>
    %198 = math.exp %197 : vector<2x128xf32>
    %cst_50 = arith.constant 1.000000e+00 : f32
    %199 = vector.broadcast %cst_50 : f32 to vector<2x128xf32>
    %200 = arith.addf %199, %198 : vector<2x128xf32>
    %201 = arith.divf %199, %200 : vector<2x128xf32>
    %202 = math.tanh %196 : vector<2x128xf32>
    %203 = vector.extract_strided_slice %201 {offsets = [0, 0], sizes = [2, 32], strides = [1, 1]} : vector<2x128xf32> to vector<2x32xf32>
    %204 = vector.extract_strided_slice %201 {offsets = [0, 32], sizes = [2, 32], strides = [1, 1]} : vector<2x128xf32> to vector<2x32xf32>
    %205 = vector.extract_strided_slice %202 {offsets = [0, 64], sizes = [2, 32], strides = [1, 1]} : vector<2x128xf32> to vector<2x32xf32>
    %206 = vector.extract_strided_slice %201 {offsets = [0, 96], sizes = [2, 32], strides = [1, 1]} : vector<2x128xf32> to vector<2x32xf32>
    %207 = arith.mulf %204, %192 : vector<2x32xf32>
    %208 = arith.mulf %203, %205 : vector<2x32xf32>
    %209 = arith.addf %207, %208 : vector<2x32xf32>
    %210 = math.tanh %209 : vector<2x32xf32>
    %211 = arith.mulf %206, %210 : vector<2x32xf32>
    %212 = vector.extract_strided_slice %190 {offsets = [2, 0], sizes = [2, 128], strides = [1, 1]} : vector<8x128xf32> to vector<2x128xf32>
    %213 = arith.truncf %211 : vector<2x32xf32> to vector<2x32xbf16>
    %cst_51 = arith.constant dense<0.000000e+00> : vector<2x128xf32>
    %214 = tpu.matmul %213, %164, %cst_51 {dimension_numbers = #tpu.dot_dimension_numbers<[1], [0], [0], [1], [0, 0, 1, 1], [], []>} : vector<2x32xbf16>, vector<32x128xbf16>, vector<2x128xf32> -> vector<2x128xf32>
    %215 = arith.addf %212, %214 : vector<2x128xf32>
    %216 = arith.negf %215 : vector<2x128xf32>
    %217 = math.exp %216 : vector<2x128xf32>
    %cst_52 = arith.constant 1.000000e+00 : f32
    %218 = vector.broadcast %cst_52 : f32 to vector<2x128xf32>
    %219 = arith.addf %218, %217 : vector<2x128xf32>
    %220 = arith.divf %218, %219 : vector<2x128xf32>
    %221 = math.tanh %215 : vector<2x128xf32>
    %222 = vector.extract_strided_slice %220 {offsets = [0, 0], sizes = [2, 32], strides = [1, 1]} : vector<2x128xf32> to vector<2x32xf32>
    %223 = vector.extract_strided_slice %220 {offsets = [0, 32], sizes = [2, 32], strides = [1, 1]} : vector<2x128xf32> to vector<2x32xf32>
    %224 = vector.extract_strided_slice %221 {offsets = [0, 64], sizes = [2, 32], strides = [1, 1]} : vector<2x128xf32> to vector<2x32xf32>
    %225 = vector.extract_strided_slice %220 {offsets = [0, 96], sizes = [2, 32], strides = [1, 1]} : vector<2x128xf32> to vector<2x32xf32>
    %226 = arith.mulf %223, %209 : vector<2x32xf32>
    %227 = arith.mulf %222, %224 : vector<2x32xf32>
    %228 = arith.addf %226, %227 : vector<2x32xf32>
    %229 = math.tanh %228 : vector<2x32xf32>
    %230 = arith.mulf %225, %229 : vector<2x32xf32>
    %231 = vector.extract_strided_slice %190 {offsets = [4, 0], sizes = [2, 128], strides = [1, 1]} : vector<8x128xf32> to vector<2x128xf32>
    %232 = arith.truncf %230 : vector<2x32xf32> to vector<2x32xbf16>
    %cst_53 = arith.constant dense<0.000000e+00> : vector<2x128xf32>
    %233 = tpu.matmul %232, %164, %cst_53 {dimension_numbers = #tpu.dot_dimension_numbers<[1], [0], [0], [1], [0, 0, 1, 1], [], []>} : vector<2x32xbf16>, vector<32x128xbf16>, vector<2x128xf32> -> vector<2x128xf32>
    %234 = arith.addf %231, %233 : vector<2x128xf32>
    %235 = arith.negf %234 : vector<2x128xf32>
    %236 = math.exp %235 : vector<2x128xf32>
    %cst_54 = arith.constant 1.000000e+00 : f32
    %237 = vector.broadcast %cst_54 : f32 to vector<2x128xf32>
    %238 = arith.addf %237, %236 : vector<2x128xf32>
    %239 = arith.divf %237, %238 : vector<2x128xf32>
    %240 = math.tanh %234 : vector<2x128xf32>
    %241 = vector.extract_strided_slice %239 {offsets = [0, 0], sizes = [2, 32], strides = [1, 1]} : vector<2x128xf32> to vector<2x32xf32>
    %242 = vector.extract_strided_slice %239 {offsets = [0, 32], sizes = [2, 32], strides = [1, 1]} : vector<2x128xf32> to vector<2x32xf32>
    %243 = vector.extract_strided_slice %240 {offsets = [0, 64], sizes = [2, 32], strides = [1, 1]} : vector<2x128xf32> to vector<2x32xf32>
    %244 = vector.extract_strided_slice %239 {offsets = [0, 96], sizes = [2, 32], strides = [1, 1]} : vector<2x128xf32> to vector<2x32xf32>
    %245 = arith.mulf %242, %228 : vector<2x32xf32>
    %246 = arith.mulf %241, %243 : vector<2x32xf32>
    %247 = arith.addf %245, %246 : vector<2x32xf32>
    %248 = math.tanh %247 : vector<2x32xf32>
    %249 = arith.mulf %244, %248 : vector<2x32xf32>
    %250 = vector.extract_strided_slice %190 {offsets = [6, 0], sizes = [2, 128], strides = [1, 1]} : vector<8x128xf32> to vector<2x128xf32>
    %251 = arith.truncf %249 : vector<2x32xf32> to vector<2x32xbf16>
    %cst_55 = arith.constant dense<0.000000e+00> : vector<2x128xf32>
    %252 = tpu.matmul %251, %164, %cst_55 {dimension_numbers = #tpu.dot_dimension_numbers<[1], [0], [0], [1], [0, 0, 1, 1], [], []>} : vector<2x32xbf16>, vector<32x128xbf16>, vector<2x128xf32> -> vector<2x128xf32>
    %253 = arith.addf %250, %252 : vector<2x128xf32>
    %254 = arith.negf %253 : vector<2x128xf32>
    %255 = math.exp %254 : vector<2x128xf32>
    %cst_56 = arith.constant 1.000000e+00 : f32
    %256 = vector.broadcast %cst_56 : f32 to vector<2x128xf32>
    %257 = arith.addf %256, %255 : vector<2x128xf32>
    %258 = arith.divf %256, %257 : vector<2x128xf32>
    %259 = math.tanh %253 : vector<2x128xf32>
    %260 = vector.extract_strided_slice %258 {offsets = [0, 0], sizes = [2, 32], strides = [1, 1]} : vector<2x128xf32> to vector<2x32xf32>
    %261 = vector.extract_strided_slice %258 {offsets = [0, 32], sizes = [2, 32], strides = [1, 1]} : vector<2x128xf32> to vector<2x32xf32>
    %262 = vector.extract_strided_slice %259 {offsets = [0, 64], sizes = [2, 32], strides = [1, 1]} : vector<2x128xf32> to vector<2x32xf32>
    %263 = vector.extract_strided_slice %258 {offsets = [0, 96], sizes = [2, 32], strides = [1, 1]} : vector<2x128xf32> to vector<2x32xf32>
    %264 = arith.mulf %261, %247 : vector<2x32xf32>
    %265 = arith.mulf %260, %262 : vector<2x32xf32>
    %266 = arith.addf %264, %265 : vector<2x32xf32>
    %267 = math.tanh %266 : vector<2x32xf32>
    %268 = arith.mulf %263, %267 : vector<2x32xf32>
    %c2_57 = arith.constant 2 : index
    %c0_58 = arith.constant 0 : index
    %c0_59 = arith.constant 0 : index
    %269 = vector.load %arg3[%c2_57, %c0_58, %c0_59] : memref<3x64x128xbf16, #tpu.memory_space<vmem>>, vector<1x64x128xbf16>
    %270 = vector.shape_cast %269 : vector<1x64x128xbf16> to vector<64x128xbf16>
    %c2_60 = arith.constant 2 : index
    %c0_61 = arith.constant 0 : index
    %c0_62 = arith.constant 0 : index
    %271 = vector.load %arg4[%c2_60, %c0_61, %c0_62] : memref<3x32x128xbf16, #tpu.memory_space<vmem>>, vector<1x32x128xbf16>
    %272 = vector.shape_cast %271 : vector<1x32x128xbf16> to vector<32x128xbf16>
    %c2_63 = arith.constant 2 : index
    %c0_64 = arith.constant 0 : index
    %273 = vector.load %arg5[%c2_63, %c0_64] : memref<4x128xf32, #tpu.memory_space<vmem>>, vector<1x128xf32>
    %274 = vector.extract_strided_slice %211 {offsets = [0, 0], sizes = [2, 16], strides = [1, 1]} : vector<2x32xf32> to vector<2x16xf32>
    %275 = vector.extract_strided_slice %268 {offsets = [0, 16], sizes = [2, 16], strides = [1, 1]} : vector<2x32xf32> to vector<2x16xf32>
    %276 = vector.extract_strided_slice %268 {offsets = [0, 0], sizes = [2, 16], strides = [1, 1]} : vector<2x32xf32> to vector<2x16xf32>
    %277 = vector.extract_strided_slice %211 {offsets = [0, 16], sizes = [2, 16], strides = [1, 1]} : vector<2x32xf32> to vector<2x16xf32>
    %278 = tpu.concatenate %274, %275, %276, %277 in 1 : vector<2x16xf32>, vector<2x16xf32>, vector<2x16xf32>, vector<2x16xf32> -> vector<2x64xf32>
    %279 = vector.extract_strided_slice %230 {offsets = [0, 0], sizes = [2, 16], strides = [1, 1]} : vector<2x32xf32> to vector<2x16xf32>
    %280 = vector.extract_strided_slice %249 {offsets = [0, 16], sizes = [2, 16], strides = [1, 1]} : vector<2x32xf32> to vector<2x16xf32>
    %281 = vector.extract_strided_slice %249 {offsets = [0, 0], sizes = [2, 16], strides = [1, 1]} : vector<2x32xf32> to vector<2x16xf32>
    %282 = vector.extract_strided_slice %230 {offsets = [0, 16], sizes = [2, 16], strides = [1, 1]} : vector<2x32xf32> to vector<2x16xf32>
    %283 = tpu.concatenate %279, %280, %281, %282 in 1 : vector<2x16xf32>, vector<2x16xf32>, vector<2x16xf32>, vector<2x16xf32> -> vector<2x64xf32>
    %284 = vector.extract_strided_slice %249 {offsets = [0, 0], sizes = [2, 16], strides = [1, 1]} : vector<2x32xf32> to vector<2x16xf32>
    %285 = vector.extract_strided_slice %230 {offsets = [0, 16], sizes = [2, 16], strides = [1, 1]} : vector<2x32xf32> to vector<2x16xf32>
    %286 = vector.extract_strided_slice %230 {offsets = [0, 0], sizes = [2, 16], strides = [1, 1]} : vector<2x32xf32> to vector<2x16xf32>
    %287 = vector.extract_strided_slice %249 {offsets = [0, 16], sizes = [2, 16], strides = [1, 1]} : vector<2x32xf32> to vector<2x16xf32>
    %288 = tpu.concatenate %284, %285, %286, %287 in 1 : vector<2x16xf32>, vector<2x16xf32>, vector<2x16xf32>, vector<2x16xf32> -> vector<2x64xf32>
    %289 = vector.extract_strided_slice %268 {offsets = [0, 0], sizes = [2, 16], strides = [1, 1]} : vector<2x32xf32> to vector<2x16xf32>
    %290 = vector.extract_strided_slice %211 {offsets = [0, 16], sizes = [2, 16], strides = [1, 1]} : vector<2x32xf32> to vector<2x16xf32>
    %291 = vector.extract_strided_slice %211 {offsets = [0, 0], sizes = [2, 16], strides = [1, 1]} : vector<2x32xf32> to vector<2x16xf32>
    %292 = vector.extract_strided_slice %268 {offsets = [0, 16], sizes = [2, 16], strides = [1, 1]} : vector<2x32xf32> to vector<2x16xf32>
    %293 = tpu.concatenate %289, %290, %291, %292 in 1 : vector<2x16xf32>, vector<2x16xf32>, vector<2x16xf32>, vector<2x16xf32> -> vector<2x64xf32>
    %294 = tpu.concatenate %278, %283, %288, %293 in 0 : vector<2x64xf32>, vector<2x64xf32>, vector<2x64xf32>, vector<2x64xf32> -> vector<8x64xf32>
    %295 = arith.truncf %294 : vector<8x64xf32> to vector<8x64xbf16>
    %cst_65 = arith.constant dense<0.000000e+00> : vector<8x128xf32>
    %296 = tpu.matmul %295, %270, %cst_65 {dimension_numbers = #tpu.dot_dimension_numbers<[1], [0], [0], [1], [0, 0, 1, 1], [], []>} : vector<8x64xbf16>, vector<64x128xbf16>, vector<8x128xf32> -> vector<8x128xf32>
    %297 = vector.broadcast %273 : vector<1x128xf32> to vector<8x128xf32>
    %298 = arith.addf %296, %297 : vector<8x128xf32>
    %cst_66 = arith.constant 0.000000e+00 : f32
    %299 = vector.broadcast %cst_66 : f32 to vector<2x32xf32>
    %cst_67 = arith.constant 0.000000e+00 : f32
    %300 = vector.broadcast %cst_67 : f32 to vector<2x32xf32>
    %301 = vector.extract_strided_slice %298 {offsets = [0, 0], sizes = [2, 128], strides = [1, 1]} : vector<8x128xf32> to vector<2x128xf32>
    %302 = arith.truncf %299 : vector<2x32xf32> to vector<2x32xbf16>
    %cst_68 = arith.constant dense<0.000000e+00> : vector<2x128xf32>
    %303 = tpu.matmul %302, %272, %cst_68 {dimension_numbers = #tpu.dot_dimension_numbers<[1], [0], [0], [1], [0, 0, 1, 1], [], []>} : vector<2x32xbf16>, vector<32x128xbf16>, vector<2x128xf32> -> vector<2x128xf32>
    %304 = arith.addf %301, %303 : vector<2x128xf32>
    %305 = arith.negf %304 : vector<2x128xf32>
    %306 = math.exp %305 : vector<2x128xf32>
    %cst_69 = arith.constant 1.000000e+00 : f32
    %307 = vector.broadcast %cst_69 : f32 to vector<2x128xf32>
    %308 = arith.addf %307, %306 : vector<2x128xf32>
    %309 = arith.divf %307, %308 : vector<2x128xf32>
    %310 = math.tanh %304 : vector<2x128xf32>
    %311 = vector.extract_strided_slice %309 {offsets = [0, 0], sizes = [2, 32], strides = [1, 1]} : vector<2x128xf32> to vector<2x32xf32>
    %312 = vector.extract_strided_slice %309 {offsets = [0, 32], sizes = [2, 32], strides = [1, 1]} : vector<2x128xf32> to vector<2x32xf32>
    %313 = vector.extract_strided_slice %310 {offsets = [0, 64], sizes = [2, 32], strides = [1, 1]} : vector<2x128xf32> to vector<2x32xf32>
    %314 = vector.extract_strided_slice %309 {offsets = [0, 96], sizes = [2, 32], strides = [1, 1]} : vector<2x128xf32> to vector<2x32xf32>
    %315 = arith.mulf %312, %300 : vector<2x32xf32>
    %316 = arith.mulf %311, %313 : vector<2x32xf32>
    %317 = arith.addf %315, %316 : vector<2x32xf32>
    %318 = math.tanh %317 : vector<2x32xf32>
    %319 = arith.mulf %314, %318 : vector<2x32xf32>
    %320 = vector.extract_strided_slice %298 {offsets = [2, 0], sizes = [2, 128], strides = [1, 1]} : vector<8x128xf32> to vector<2x128xf32>
    %321 = arith.truncf %319 : vector<2x32xf32> to vector<2x32xbf16>
    %cst_70 = arith.constant dense<0.000000e+00> : vector<2x128xf32>
    %322 = tpu.matmul %321, %272, %cst_70 {dimension_numbers = #tpu.dot_dimension_numbers<[1], [0], [0], [1], [0, 0, 1, 1], [], []>} : vector<2x32xbf16>, vector<32x128xbf16>, vector<2x128xf32> -> vector<2x128xf32>
    %323 = arith.addf %320, %322 : vector<2x128xf32>
    %324 = arith.negf %323 : vector<2x128xf32>
    %325 = math.exp %324 : vector<2x128xf32>
    %cst_71 = arith.constant 1.000000e+00 : f32
    %326 = vector.broadcast %cst_71 : f32 to vector<2x128xf32>
    %327 = arith.addf %326, %325 : vector<2x128xf32>
    %328 = arith.divf %326, %327 : vector<2x128xf32>
    %329 = math.tanh %323 : vector<2x128xf32>
    %330 = vector.extract_strided_slice %328 {offsets = [0, 0], sizes = [2, 32], strides = [1, 1]} : vector<2x128xf32> to vector<2x32xf32>
    %331 = vector.extract_strided_slice %328 {offsets = [0, 32], sizes = [2, 32], strides = [1, 1]} : vector<2x128xf32> to vector<2x32xf32>
    %332 = vector.extract_strided_slice %329 {offsets = [0, 64], sizes = [2, 32], strides = [1, 1]} : vector<2x128xf32> to vector<2x32xf32>
    %333 = vector.extract_strided_slice %328 {offsets = [0, 96], sizes = [2, 32], strides = [1, 1]} : vector<2x128xf32> to vector<2x32xf32>
    %334 = arith.mulf %331, %317 : vector<2x32xf32>
    %335 = arith.mulf %330, %332 : vector<2x32xf32>
    %336 = arith.addf %334, %335 : vector<2x32xf32>
    %337 = math.tanh %336 : vector<2x32xf32>
    %338 = arith.mulf %333, %337 : vector<2x32xf32>
    %339 = vector.extract_strided_slice %298 {offsets = [4, 0], sizes = [2, 128], strides = [1, 1]} : vector<8x128xf32> to vector<2x128xf32>
    %340 = arith.truncf %338 : vector<2x32xf32> to vector<2x32xbf16>
    %cst_72 = arith.constant dense<0.000000e+00> : vector<2x128xf32>
    %341 = tpu.matmul %340, %272, %cst_72 {dimension_numbers = #tpu.dot_dimension_numbers<[1], [0], [0], [1], [0, 0, 1, 1], [], []>} : vector<2x32xbf16>, vector<32x128xbf16>, vector<2x128xf32> -> vector<2x128xf32>
    %342 = arith.addf %339, %341 : vector<2x128xf32>
    %343 = arith.negf %342 : vector<2x128xf32>
    %344 = math.exp %343 : vector<2x128xf32>
    %cst_73 = arith.constant 1.000000e+00 : f32
    %345 = vector.broadcast %cst_73 : f32 to vector<2x128xf32>
    %346 = arith.addf %345, %344 : vector<2x128xf32>
    %347 = arith.divf %345, %346 : vector<2x128xf32>
    %348 = math.tanh %342 : vector<2x128xf32>
    %349 = vector.extract_strided_slice %347 {offsets = [0, 0], sizes = [2, 32], strides = [1, 1]} : vector<2x128xf32> to vector<2x32xf32>
    %350 = vector.extract_strided_slice %347 {offsets = [0, 32], sizes = [2, 32], strides = [1, 1]} : vector<2x128xf32> to vector<2x32xf32>
    %351 = vector.extract_strided_slice %348 {offsets = [0, 64], sizes = [2, 32], strides = [1, 1]} : vector<2x128xf32> to vector<2x32xf32>
    %352 = vector.extract_strided_slice %347 {offsets = [0, 96], sizes = [2, 32], strides = [1, 1]} : vector<2x128xf32> to vector<2x32xf32>
    %353 = arith.mulf %350, %336 : vector<2x32xf32>
    %354 = arith.mulf %349, %351 : vector<2x32xf32>
    %355 = arith.addf %353, %354 : vector<2x32xf32>
    %356 = math.tanh %355 : vector<2x32xf32>
    %357 = arith.mulf %352, %356 : vector<2x32xf32>
    %358 = vector.extract_strided_slice %298 {offsets = [6, 0], sizes = [2, 128], strides = [1, 1]} : vector<8x128xf32> to vector<2x128xf32>
    %359 = arith.truncf %357 : vector<2x32xf32> to vector<2x32xbf16>
    %cst_74 = arith.constant dense<0.000000e+00> : vector<2x128xf32>
    %360 = tpu.matmul %359, %272, %cst_74 {dimension_numbers = #tpu.dot_dimension_numbers<[1], [0], [0], [1], [0, 0, 1, 1], [], []>} : vector<2x32xbf16>, vector<32x128xbf16>, vector<2x128xf32> -> vector<2x128xf32>
    %361 = arith.addf %358, %360 : vector<2x128xf32>
    %362 = arith.negf %361 : vector<2x128xf32>
    %363 = math.exp %362 : vector<2x128xf32>
    %cst_75 = arith.constant 1.000000e+00 : f32
    %364 = vector.broadcast %cst_75 : f32 to vector<2x128xf32>
    %365 = arith.addf %364, %363 : vector<2x128xf32>
    %366 = arith.divf %364, %365 : vector<2x128xf32>
    %367 = math.tanh %361 : vector<2x128xf32>
    %368 = vector.extract_strided_slice %366 {offsets = [0, 0], sizes = [2, 32], strides = [1, 1]} : vector<2x128xf32> to vector<2x32xf32>
    %369 = vector.extract_strided_slice %366 {offsets = [0, 32], sizes = [2, 32], strides = [1, 1]} : vector<2x128xf32> to vector<2x32xf32>
    %370 = vector.extract_strided_slice %367 {offsets = [0, 64], sizes = [2, 32], strides = [1, 1]} : vector<2x128xf32> to vector<2x32xf32>
    %371 = vector.extract_strided_slice %366 {offsets = [0, 96], sizes = [2, 32], strides = [1, 1]} : vector<2x128xf32> to vector<2x32xf32>
    %372 = arith.mulf %369, %355 : vector<2x32xf32>
    %373 = arith.mulf %368, %370 : vector<2x32xf32>
    %374 = arith.addf %372, %373 : vector<2x32xf32>
    %375 = math.tanh %374 : vector<2x32xf32>
    %376 = arith.mulf %371, %375 : vector<2x32xf32>
    %377 = arith.truncf %376 : vector<2x32xf32> to vector<2x32xbf16>
    %c0_76 = arith.constant 0 : index
    %c0_77 = arith.constant 0 : index
    %378 = vector.load %arg6[%c0_76, %c0_77] : memref<32x128xbf16, #tpu.memory_space<vmem>>, vector<32x128xbf16>
    %cst_78 = arith.constant dense<0.000000e+00> : vector<2x128xf32>
    %379 = tpu.matmul %377, %378, %cst_78 {dimension_numbers = #tpu.dot_dimension_numbers<[1], [0], [0], [1], [0, 0, 1, 1], [], []>} : vector<2x32xbf16>, vector<32x128xbf16>, vector<2x128xf32> -> vector<2x128xf32>
    %c3_79 = arith.constant 3 : index
    %c0_80 = arith.constant 0 : index
    %380 = vector.load %arg5[%c3_79, %c0_80] : memref<4x128xf32, #tpu.memory_space<vmem>>, vector<1x128xf32>
    %381 = vector.broadcast %380 : vector<1x128xf32> to vector<2x128xf32>
    %382 = arith.addf %379, %381 : vector<2x128xf32>
    %c0_81 = arith.constant 0 : index
    %c0_82 = arith.constant 0 : index
    %383 = vector.load %arg7[%c0_81, %c0_82] : memref<2x128xf32, #tpu.memory_space<vmem>>, vector<2x128xf32>
    tpu.vector_store %arg7[%c0_81, %c0_82], %382 {strides = array<i32>} : memref<2x128xf32, #tpu.memory_space<vmem>>, vector<2x128xf32>,
    return
  }
}

</mosaic_0001>

<llo_original>
// kernel: net_project_forward.1
$region0: #{net_project_forward.1}
  #allocation0 [shape = 'u32[]', space=smem, size = 0x4, offset = 0x4, fixed_abs, tag = 'smem constant byte address 0x4 - core index']
  #allocation1 [shape = 'u32[72,128]{1,0:T(1,128)}', space=vmem, size = 0x9000, scoped, tag = 'internal scratch']
  %s0 = inlined_call_operand.vmem [shape: f32[64,24], index: 0, kind: input, shape index: {}]
  %s1 = inlined_call_operand.vmem [shape: bf16[2,24,8], index: 1, kind: input, shape index: {}]
  %s2 = inlined_call_operand.vmem [shape: f32[6,8], index: 2, kind: input, shape index: {}]
  %s3 = inlined_call_operand.vmem [shape: bf16[3,64,128], index: 3, kind: input, shape index: {}]
  %s4 = inlined_call_operand.vmem [shape: bf16[3,32,128], index: 4, kind: input, shape index: {}]
  %s5 = inlined_call_operand.vmem [shape: f32[4,128], index: 5, kind: input, shape index: {}]
  %s6 = inlined_call_operand.vmem [shape: bf16[32,128], index: 6, kind: input, shape index: {}]
  %s7 = inlined_call_operand.hbm [shape: f32[2,128], index: 7, kind: output, shape index: {}]
  %s8 = sld [smem:[#allocation0]]
  $region38: #{net_project_forward.1} parent=0
    _
  %s10 = ssub.s32 1, %s8
  %s11 = scalar_select 0, %s10, %s8
  $region1: #{net_project_forward.1} parent=0
    #allocation2 [shape = 'u8[1024]{0}', space=vmem, size = 0x400, scoped, tag = 'output window, operand 0, single buffered']
    #allocation3 [shape = 's32[1]{0}', space=sflag, size = 0x4, scoped, tag = 'scoped memory for net_project_forward.1']
    %12 = vsyncpa [#allocation3], 0
    // Predicated region
    $region2: #{net_project_forward.1} parent=1 // pred_check
      _
    $region3: #{net_project_forward.1} parent=1 // pred_check_branch
      %14 = sbr.rel (0) target = $region5
    $region4: #{net_project_forward.1} parent=1 // pred_region
      _
    $region5: #{net_project_forward.1} parent=1 // pred_fallthru
      _
    // Predicated region
    $region6: #{net_project_forward.1} parent=1 // pred_check
      _
    $region7: #{net_project_forward.1} parent=1 // pred_check_branch
      %16 = sbr.rel (0) target = $region9
    $region8: #{net_project_forward.1} parent=1 // pred_region
      _
    $region9: #{net_project_forward.1} parent=1 // pred_fallthru
      _
    // Predicated region
    $region10: #{net_project_forward.1} parent=1 // pred_check
      _
    $region11: #{net_project_forward.1} parent=1 // pred_check_branch
      %18 = sbr.rel (0) target = $region13
    $region12: #{net_project_forward.1} parent=1 // pred_region
      _
    $region13: #{net_project_forward.1} parent=1 // pred_fallthru
      _
    // Predicated region
    $region14: #{net_project_forward.1} parent=1 // pred_check
      _
    $region15: #{net_project_forward.1} parent=1 // pred_check_branch
      %20 = sbr.rel (0) target = $region17
    $region16: #{net_project_forward.1} parent=1 // pred_region
      _
    $region17: #{net_project_forward.1} parent=1 // pred_fallthru
      _
    // Predicated region
    $region18: #{net_project_forward.1} parent=1 // pred_check
      _
    $region19: #{net_project_forward.1} parent=1 // pred_check_branch
      %22 = sbr.rel (0) target = $region21
    $region20: #{net_project_forward.1} parent=1 // pred_region
      _
    $region21: #{net_project_forward.1} parent=1 // pred_fallthru
      _
    // Predicated region
    $region22: #{net_project_forward.1} parent=1 // pred_check
      _
    $region23: #{net_project_forward.1} parent=1 // pred_check_branch
      %24 = sbr.rel (0) target = $region25
    $region24: #{net_project_forward.1} parent=1 // pred_region
      _
    $region25: #{net_project_forward.1} parent=1 // pred_fallthru
      _
    // Predicated region
    $region26: #{net_project_forward.1} parent=1 // pred_check
      _
    $region27: #{net_project_forward.1} parent=1 // pred_check_branch
      %26 = sbr.rel (0) target = $region29
    $region28: #{net_project_forward.1} parent=1 // pred_region
      _
    $region29: #{net_project_forward.1} parent=1 // pred_fallthru
      _
    %v28 = vld [vmem:[%s0] sm:$0xff]
    %v29 = vld [vmem:[%s0 + $0x8] sm:$0xff]
    %v30 = vld [vmem:[%s0 + $0x10] sm:$0xff]
    %v31 = vld [vmem:[%s0 + $0x18] sm:$0xff]
    %v32 = vld [vmem:[%s0 + $0x20] sm:$0xff]
    %v33 = vld [vmem:[%s0 + $0x28] sm:$0xff]
    %v34 = vld [vmem:[%s0 + $0x30] sm:$0xff]
    %v35 = vld [vmem:[%s0 + $0x38] sm:$0xff]
    %v36 = vpack.c.bf16 %v29, %v28
    %v37 = vpack.c.bf16 %v31, %v30
    %v38 = vpack.c.bf16 %v33, %v32
    %v39 = vpack.c.bf16 %v35, %v34
    %v40 = vld [vmem:[%s1] sm:$0xf]
    %v41 = vld [vmem:[%s1 + $0x4] sm:$0xf]
    %v42 = vld [vmem:[%s1 + $0x8] sm:$0xf]
    %v43 = vld [vmem:[%s2] sm:$0x1]
    %v44 = vperm.slane %v43, 0
    %v48 = vunpack.c.l.b16 %v40
    %v49 = vunpack.c.l.b16 %v41
    %v50 = vunpack.c.l.b16 %v42
    %v51 = vpack.c.b16 %v49, %v48
    %v52 = vpack.c.b16 %v50, %v50
    %vm54 = vcmask 195584
    %v56 = vsel %vm54, %v36, 0
    %v59 = vsel %vm54, %v37, 0
    %v62 = vsel %vm54, %v38, 0
    %v65 = vsel %vm54, %v39, 0
    %vm67 = vcmask 1043456
    %v69 = vsel %vm67, %v52, 0
    %71 = vmatpush.bf16.msra.mxu0 0
    %72 = vmatpush.bf16.msra.mxu0 0
    %73 = vmatpush.bf16.msra.mxu0 0
    %74 = vmatpush.bf16.msra.mxu0 0
    %75 = vmatpush.bf16.msra.mxu0 0
    %76 = vmatpush.bf16.msra.mxu0 0
    %77 = vmatpush.bf16.msra.mxu0 %v69
    %78 = vmatpush.bf16.msra.mxu0 %v51
    %79 = vmatmul.bf16.gmra.mxu0 %v56
    %v80 = vpop.f32.mrf.mxu0
    %v81 = vadd.f32 %v44, %v80
    %v82 = vpop.f32.mrf.mxu0
    %v83 = vadd.f32 %v44, %v82
    %84 = vmatmul.bf16.gmra.mxu0 %v59
    %v85 = vpop.f32.mrf.mxu0
    %v86 = vadd.f32 %v44, %v85
    %v87 = vpop.f32.mrf.mxu0
    %v88 = vadd.f32 %v44, %v87
    %89 = vmatmul.bf16.gmra.mxu0 %v62
    %v90 = vpop.f32.mrf.mxu0
    %v91 = vadd.f32 %v44, %v90
    %v92 = vpop.f32.mrf.mxu0
    %v93 = vadd.f32 %v44, %v92
    %94 = vmatmul.bf16.gmra.mxu0 %v65
    %v95 = vpop.f32.mrf.mxu0
    %v96 = vadd.f32 %v44, %v95
    %v97 = vpop.f32.mrf.mxu0
    %v98 = vadd.f32 %v44, %v97
    %99 = vdwg.mxu0
    %v100 = vmax.f32 %v81, 0.0
    %v101 = vmax.f32 %v83, 0.0
    %v102 = vmax.f32 %v86, 0.0
    %v103 = vmax.f32 %v88, 0.0
    %v104 = vmax.f32 %v91, 0.0
    %v105 = vmax.f32 %v93, 0.0
    %v106 = vmax.f32 %v96, 0.0
    %v107 = vmax.f32 %v98, 0.0
    %v108 = vmax.f32 %v100, %v104
    %v109 = vmax.f32 %v101, %v105
    %v110 = vmax.f32 %v102, %v106
    %v111 = vmax.f32 %v103, %v107
    %v112 = vld [vmem:[%s2 + $0x1] sm:$0x1]
    %v113 = vperm.slane %v112, 0
    %v114 = vmul.f32 %v108, %v113
    %v115 = vmul.f32 %v109, %v113
    %v116 = vmul.f32 %v110, %v113
    %v117 = vmul.f32 %v111, %v113
    %v118 = vld [vmem:[%s2 + $0x2] sm:$0x1]
    %v119 = vperm.slane %v118, 0
    %v120 = vadd.f32 %v114, %v119
    %v121 = vadd.f32 %v115, %v119
    %v122 = vadd.f32 %v116, %v119
    %v123 = vadd.f32 %v117, %v119
    %v125 = vrot.slane %v121, 3
    %vm127 = vcmask 1040384
    %v128 = vsel %vm127, 0.0, %v125
    %130 = vrot.lane.b32.xlu0 %v120, 8
    %v131 = vpop.permute.xlu0 %130
    %v133 = vrot.slane %v120, 4
    %134 = vrot.lane.b32.xlu0 %v133, 16
    %v135 = vpop.permute.xlu0 %134
    %vm137 = vcmask 64512
    %v138 = vsel %vm137, %v128, %v131
    %vm139 = vcmask 130048
    %v140 = vsel %vm139, %v138, %v135
    %v141 = vrot.slane %v121, 4
    %142 = vrot.lane.b32.xlu0 %v141, 8
    %v143 = vpop.permute.xlu0 %142
    %145 = vrot.lane.b32.xlu0 %v121, 16
    %v146 = vpop.permute.xlu0 %145
    %v148 = vsel %vm137, %v120, %v143
    %v149 = vsel %vm139, %v148, %v146
    %v151 = vrot.slane %v123, 3
    %v153 = vsel %vm127, 0.0, %v151
    %155 = vrot.lane.b32.xlu0 %v122, 8
    %v156 = vpop.permute.xlu0 %155
    %v158 = vrot.slane %v122, 4
    %159 = vrot.lane.b32.xlu0 %v158, 16
    %v160 = vpop.permute.xlu0 %159
    %v162 = vsel %vm137, %v153, %v156
    %v163 = vsel %vm139, %v162, %v160
    %v164 = vrot.slane %v123, 4
    %165 = vrot.lane.b32.xlu0 %v164, 8
    %v166 = vpop.permute.xlu0 %165
    %168 = vrot.lane.b32.xlu0 %v123, 16
    %v169 = vpop.permute.xlu0 %168
    %v171 = vsel %vm137, %v122, %v166
    %v172 = vsel %vm139, %v171, %v169
    %v174 = vrot.slane %v163, 4
    %v177 = vrot.slane %v149, 4
    %v179 = vsel %vm67, %v140, %v174
    %v180 = vsel %vm67, %v177, %v172
    %v181 = vpack.c.bf16 %v180, %v179
    %s182 = scalar_lea.vmem %s1, 12
    %v183 = vld [vmem:[%s182] sm:$0xf]
    %v184 = vld [vmem:[%s182 + $0x4] sm:$0xf]
    %v185 = vld [vmem:[%s182 + $0x8] sm:$0xf]
    %v186 = vld [vmem:[%s2 + $0x3] sm:$0x1]
    %v187 = vperm.slane %v186, 0
    %v191 = vunpack.c.l.b16 %v183
    %v192 = vunpack.c.l.b16 %v184
    %v193 = vunpack.c.l.b16 %v185
    %v194 = vpack.c.b16 %v192, %v191
    %v195 = vpack.c.b16 %v193, %v193
    %v198 = vsel %vm54, %v181, 0
    %v201 = vsel %vm67, %v195, 0
    %203 = vmatpush.bf16.msra.mxu0 0
    %204 = vmatpush.bf16.msra.mxu0 0
    %205 = vmatpush.bf16.msra.mxu0 0
    %206 = vmatpush.bf16.msra.mxu0 0
    %207 = vmatpush.bf16.msra.mxu0 0
    %208 = vmatpush.bf16.msra.mxu0 0
    %209 = vmatpush.bf16.msra.mxu0 %v201
    %210 = vmatpush.bf16.msra.mxu0 %v194
    %211 = vmatmul.bf16.gmra.mxu0 %v198
    %v212 = vpop.f32.mrf.mxu0
    %v213 = vadd.f32 %v187, %v212
    %v214 = vpop.f32.mrf.mxu0
    %v215 = vadd.f32 %v187, %v214
    %216 = vdwg.mxu0
    %v217 = vmax.f32 %v213, 0.0
    %v218 = vmax.f32 %v215, 0.0
    %v219 = vmax.f32 %v217, %v218
    %v220 = vld [vmem:[%s2 + $0x4] sm:$0x1]
    %v221 = vperm.slane %v220, 0
    %v222 = vmul.f32 %v219, %v221
    %v223 = vld [vmem:[%s2 + $0x5] sm:$0x1]
    %v224 = vperm.slane %v223, 0
    %v225 = vadd.f32 %v222, %v224
    %v227 = vrot.slane %v225, 3
    %v229 = vsel %vm127, %v225, %v227
    %v230 = vrot.slane %v225, 1
    %v232 = vrot.slane %v225, 4
    %v234 = vsel %vm127, %v230, %v232
    %v235 = vrot.slane %v225, 2
    %v237 = vrot.slane %v225, 5
    %v239 = vsel %vm127, %v235, %v237
    %v240 = vrot.slane %v225, 6
    %v242 = vsel %vm127, %v227, %v240
    %v243 = vld [vmem:[%s3] sm:$0xf]
    %v244 = vld [vmem:[%s3 + $0x4] sm:$0xf]
    %v245 = vld [vmem:[%s4] sm:$0xf]
    %v246 = vld [vmem:[%s4 + $0x4] sm:$0xf]
    %v247 = vld [vmem:[%s4 + $0x8] sm:$0xf]
    %v248 = vld [vmem:[%s4 + $0xc] sm:$0xf]
    %v249 = vld [vmem:[%s5] sm:$0x1]
    %251 = vrot.lane.b32.xlu0 %v242, 8
    %v252 = vpop.permute.xlu0 %251
    %v254 = vsel %vm137, %v229, %v252
    %256 = vrot.lane.b32.xlu0 %v239, 8
    %v257 = vpop.permute.xlu0 %256
    %v259 = vsel %vm137, %v234, %v257
    %261 = vrot.lane.b32.xlu0 %v234, 8
    %v262 = vpop.permute.xlu0 %261
    %v264 = vsel %vm137, %v239, %v262
    %266 = vrot.lane.b32.xlu0 %v229, 8
    %v267 = vpop.permute.xlu0 %266
    %v269 = vsel %vm137, %v242, %v267
    %v271 = vrot.slane %v259, 6
    %v274 = vrot.slane %v264, 4
    %v277 = vrot.slane %v269, 2
    %vm279 = vcmask 1041408
    %v280 = vsel %vm279, %v254, %v271
    %v281 = vsel %vm67, %v280, %v274
    %vm282 = vcmask 1045504
    %v283 = vsel %vm282, %v281, %v277
    %v284 = vpack.c.bf16 %v283, %v283
    %v285 = vperm.slane %v249, 0
    %v288 = vunpack.c.l.b16 %v243
    %v289 = vunpack.c.l.b16 %v244
    %v290 = vpack.c.b16 %v289, %v288
    %v293 = vsel %vm139, %v284, 0
    %295 = vmatpush.bf16.msra.mxu0 0
    %296 = vmatpush.bf16.msra.mxu0 0
    %297 = vmatpush.bf16.msra.mxu0 0
    %298 = vmatpush.bf16.msra.mxu0 0
    %299 = vmatpush.bf16.msra.mxu0 0
    %300 = vmatpush.bf16.msra.mxu0 0
    %301 = vmatpush.bf16.msra.mxu0 0
    %302 = vmatpush.bf16.msra.mxu0 %v290
    %303 = vmatmul.bf16.gmra.mxu0 %v293
    %v304 = vpop.f32.mrf.mxu0
    %v305 = vadd.f32 %v285, %v304
    %v306 = vpop.f32.mrf.mxu0
    %307 = vdwg.mxu0
    %v312 = vunpack.c.l.b16 %v245
    %v313 = vunpack.c.l.b16 %v246
    %v314 = vunpack.c.l.b16 %v247
    %v315 = vunpack.c.l.b16 %v248
    %v316 = vpack.c.b16 %v313, %v312
    %v317 = vpack.c.b16 %v315, %v314
    %vm320 = vcmask 261120
    %v322 = vsel %vm320, 0, 0
    %324 = vmatpush.bf16.msra.mxu0 0
    %325 = vmatpush.bf16.msra.mxu0 0
    %326 = vmatpush.bf16.msra.mxu0 0
    %327 = vmatpush.bf16.msra.mxu0 0
    %328 = vmatpush.bf16.msra.mxu0 0
    %329 = vmatpush.bf16.msra.mxu0 0
    %330 = vmatpush.bf16.msra.mxu0 %v317
    %331 = vmatpush.bf16.msra.mxu0 %v316
    %332 = vmatmul.bf16.gmra.mxu0 %v322
    %v333 = vpop.f32.mrf.mxu0
    %v334 = vadd.f32 0.0, %v333
    %v335 = vpop.f32.mrf.mxu0
    %336 = vdwg.mxu0
    %v337 = vadd.f32 %v305, %v334
    %v338 = vxor.u32 %v337, 2147483648
    %v339 = vmul.f32 %v338, 1.442695
    %v340 = vpow.pop %v339
    %v341 = vadd.f32 %v340, 1.0
    %v342 = vrcp.pop %v341
    %v343 = vmul.f32 %v341, %v342
    %v344 = vsub.f32 1.0, %v343
    %v345 = vmul.f32 %v342, %v344
    %v346 = vadd.f32 %v342, %v345
    %vm347 = vweird.f32 %v341
    %vm348 = vweird.f32 %v342
    %vm349 = vmor %vm347, %vm348
    %v350 = vsel %vm349, %v342, %v346
    %v351 = vand.u32 2147483647, %v341
    %vm352 = vcmp.eq.f32.partialorder %v351, 8.507059e+37
    %v353 = vand.u32 %v341, 2147483648
    %v354 = vor.u32 1.1754944e-38, %v353
    %v355 = vsel %vm352, %v354, %v350
    %v356 = vmul.f32 1.0, %v355
    %v357 = vtanh.pop %v337
    %v358 = vmul.f32 %v356, 0.0
    %360 = vrot.lane.b32.xlu0 %v357, 64
    %v361 = vpop.permute.xlu0 %360
    %v363 = vmul.f32 %v356, %v361
    %365 = vrot.lane.b32.xlu0 %v363, 32
    %v366 = vpop.permute.xlu0 %365
    %v368 = vadd.f32 %v358, %v366
    %v369 = vtanh.pop %v368
    %371 = vrot.lane.b32.xlu0 %v369, 64
    %v372 = vpop.permute.xlu0 %371
    %v374 = vmul.f32 %v356, %v372
    %v375 = vpack.c.bf16 %v374, %v374
    %377 = vrot.lane.b32.xlu0 %v375, 32
    %v378 = vpop.permute.xlu0 %377
    %v380 = vsel %vm320, %v378, 0
    %382 = vmatpush.bf16.msra.mxu0 0
    %383 = vmatpush.bf16.msra.mxu0 0
    %384 = vmatpush.bf16.msra.mxu0 0
    %385 = vmatpush.bf16.msra.mxu0 0
    %386 = vmatpush.bf16.msra.mxu0 0
    %387 = vmatpush.bf16.msra.mxu0 0
    %388 = vmatpush.bf16.msra.mxu0 %v317
    %389 = vmatpush.bf16.msra.mxu0 %v316
    %390 = vmatmul.bf16.gmra.mxu0 %v380
    %v391 = vpop.f32.mrf.mxu0
    %v392 = vadd.f32 0.0, %v391
    %v393 = vpop.f32.mrf.mxu0
    %394 = vdwg.mxu0
    %v396 = vrot.slane %v392, 6
    %v398 = vadd.f32 %v305, %v396
    %v399 = vxor.u32 %v398, 2147483648
    %v400 = vmul.f32 %v399, 1.442695
    %v401 = vpow.pop %v400
    %v402 = vadd.f32 %v401, 1.0
    %v403 = vrcp.pop %v402
    %v404 = vmul.f32 %v402, %v403
    %v405 = vsub.f32 1.0, %v404
    %v406 = vmul.f32 %v403, %v405
    %v407 = vadd.f32 %v403, %v406
    %vm408 = vweird.f32 %v402
    %vm409 = vweird.f32 %v403
    %vm410 = vmor %vm408, %vm409
    %v411 = vsel %vm410, %v403, %v407
    %v412 = vand.u32 2147483647, %v402
    %vm413 = vcmp.eq.f32.partialorder %v412, 8.507059e+37
    %v414 = vand.u32 %v402, 2147483648
    %v415 = vor.u32 1.1754944e-38, %v414
    %v416 = vsel %vm413, %v415, %v411
    %v417 = vmul.f32 1.0, %v416
    %v418 = vtanh.pop %v398
    %v420 = vrot.slane %v368, 6
    %v422 = vmul.f32 %v417, %v420
    %424 = vrot.lane.b32.xlu0 %v418, 64
    %v425 = vpop.permute.xlu0 %424
    %v427 = vmul.f32 %v417, %v425
    %429 = vrot.lane.b32.xlu0 %v427, 32
    %v430 = vpop.permute.xlu0 %429
    %v432 = vadd.f32 %v422, %v430
    %v433 = vtanh.pop %v432
    %435 = vrot.lane.b32.xlu0 %v433, 64
    %v436 = vpop.permute.xlu0 %435
    %v438 = vmul.f32 %v417, %v436
    %v439 = vpack.c.bf16 %v438, %v438
    %v441 = vrot.slane %v439, 1
    %442 = vrot.lane.b32.xlu0 %v441, 32
    %v443 = vpop.permute.xlu0 %442
    %v445 = vsel %vm320, %v443, 0
    %447 = vmatpush.bf16.msra.mxu0 0
    %448 = vmatpush.bf16.msra.mxu0 0
    %449 = vmatpush.bf16.msra.mxu0 0
    %450 = vmatpush.bf16.msra.mxu0 0
    %451 = vmatpush.bf16.msra.mxu0 0
    %452 = vmatpush.bf16.msra.mxu0 0
    %453 = vmatpush.bf16.msra.mxu0 %v317
    %454 = vmatpush.bf16.msra.mxu0 %v316
    %455 = vmatmul.bf16.gmra.mxu0 %v445
    %v456 = vpop.f32.mrf.mxu0
    %v457 = vadd.f32 0.0, %v456
    %v458 = vpop.f32.mrf.mxu0
    %459 = vdwg.mxu0
    %v461 = vrot.slane %v457, 4
    %v463 = vadd.f32 %v305, %v461
    %v464 = vxor.u32 %v463, 2147483648
    %v465 = vmul.f32 %v464, 1.442695
    %v466 = vpow.pop %v465
    %v467 = vadd.f32 %v466, 1.0
    %v468 = vrcp.pop %v467
    %v469 = vmul.f32 %v467, %v468
    %v470 = vsub.f32 1.0, %v469
    %v471 = vmul.f32 %v468, %v470
    %v472 = vadd.f32 %v468, %v471
    %vm473 = vweird.f32 %v467
    %vm474 = vweird.f32 %v468
    %vm475 = vmor %vm473, %vm474
    %v476 = vsel %vm475, %v468, %v472
    %v477 = vand.u32 2147483647, %v467
    %vm478 = vcmp.eq.f32.partialorder %v477, 8.507059e+37
    %v479 = vand.u32 %v467, 2147483648
    %v480 = vor.u32 1.1754944e-38, %v479
    %v481 = vsel %vm478, %v480, %v476
    %v482 = vmul.f32 1.0, %v481
    %v483 = vtanh.pop %v463
    %v485 = vrot.slane %v432, 6
    %v487 = vmul.f32 %v482, %v485
    %489 = vrot.lane.b32.xlu0 %v483, 64
    %v490 = vpop.permute.xlu0 %489
    %v492 = vmul.f32 %v482, %v490
    %494 = vrot.lane.b32.xlu0 %v492, 32
    %v495 = vpop.permute.xlu0 %494
    %v497 = vadd.f32 %v487, %v495
    %v498 = vtanh.pop %v497
    %500 = vrot.lane.b32.xlu0 %v498, 64
    %v501 = vpop.permute.xlu0 %500
    %v503 = vmul.f32 %v482, %v501
    %v504 = vpack.c.bf16 %v503, %v503
    %v506 = vrot.slane %v504, 2
    %507 = vrot.lane.b32.xlu0 %v506, 32
    %v508 = vpop.permute.xlu0 %507
    %v510 = vsel %vm320, %v508, 0
    %512 = vmatpush.bf16.msra.mxu0 0
    %513 = vmatpush.bf16.msra.mxu0 0
    %514 = vmatpush.bf16.msra.mxu0 0
    %515 = vmatpush.bf16.msra.mxu0 0
    %516 = vmatpush.bf16.msra.mxu0 0
    %517 = vmatpush.bf16.msra.mxu0 0
    %518 = vmatpush.bf16.msra.mxu0 %v317
    %519 = vmatpush.bf16.msra.mxu0 %v316
    %520 = vmatmul.bf16.gmra.mxu0 %v510
    %v521 = vpop.f32.mrf.mxu0
    %v522 = vadd.f32 0.0, %v521
    %v523 = vpop.f32.mrf.mxu0
    %524 = vdwg.mxu0
    %v526 = vrot.slane %v522, 2
    %v528 = vadd.f32 %v305, %v526
    %v529 = vxor.u32 %v528, 2147483648
    %v530 = vmul.f32 %v529, 1.442695
    %v531 = vpow.pop %v530
    %v532 = vadd.f32 %v531, 1.0
    %v533 = vrcp.pop %v532
    %v534 = vmul.f32 %v532, %v533
    %v535 = vsub.f32 1.0, %v534
    %v536 = vmul.f32 %v533, %v535
    %v537 = vadd.f32 %v533, %v536
    %vm538 = vweird.f32 %v532
    %vm539 = vweird.f32 %v533
    %vm540 = vmor %vm538, %vm539
    %v541 = vsel %vm540, %v533, %v537
    %v542 = vand.u32 2147483647, %v532
    %vm543 = vcmp.eq.f32.partialorder %v542, 8.507059e+37
    %v544 = vand.u32 %v532, 2147483648
    %v545 = vor.u32 1.1754944e-38, %v544
    %v546 = vsel %vm543, %v545, %v541
    %v547 = vmul.f32 1.0, %v546
    %v548 = vtanh.pop %v528
    %v550 = vrot.slane %v497, 6
    %v552 = vmul.f32 %v547, %v550
    %554 = vrot.lane.b32.xlu0 %v548, 64
    %v555 = vpop.permute.xlu0 %554
    %v557 = vmul.f32 %v547, %v555
    %559 = vrot.lane.b32.xlu0 %v557, 32
    %v560 = vpop.permute.xlu0 %559
    %v562 = vadd.f32 %v552, %v560
    %v563 = vtanh.pop %v562
    %565 = vrot.lane.b32.xlu0 %v563, 64
    %v566 = vpop.permute.xlu0 %565
    %v568 = vmul.f32 %v547, %v566
    %s569 = scalar_lea.vmem %s3, 32
    %v570 = vld [vmem:[%s569] sm:$0xf]
    %v571 = vld [vmem:[%s569 + $0x4] sm:$0xf]
    %v572 = vld [vmem:[%s569 + $0x8] sm:$0xf]
    %v573 = vld [vmem:[%s569 + $0xc] sm:$0xf]
    %v574 = vld [vmem:[%s569 + $0x10] sm:$0xf]
    %v575 = vld [vmem:[%s569 + $0x14] sm:$0xf]
    %v576 = vld [vmem:[%s569 + $0x18] sm:$0xf]
    %v577 = vld [vmem:[%s569 + $0x1c] sm:$0xf]
    %s578 = scalar_lea.vmem %s4, 16
    %v579 = vld [vmem:[%s578] sm:$0xf]
    %v580 = vld [vmem:[%s578 + $0x4] sm:$0xf]
    %v581 = vld [vmem:[%s578 + $0x8] sm:$0xf]
    %v582 = vld [vmem:[%s578 + $0xc] sm:$0xf]
    %v583 = vld [vmem:[%s5 + $0x1] sm:$0x1]
    %585 = vrot.lane.b32.xlu0 %v374, 32
    %v586 = vpop.permute.xlu0 %585
    %v589 = vrot.slane %v568, 6
    %590 = vrot.lane.b32.xlu0 %v589, 32
    %v591 = vpop.permute.xlu0 %590
    %593 = vrot.lane.b32.xlu0 %v589, 64
    %v594 = vpop.permute.xlu0 %593
    %596 = vrot.lane.b32.xlu0 %v374, 64
    %v597 = vpop.permute.xlu0 %596
    %v599 = vsel %vm139, %v586, %v591
    %v600 = vsel %vm320, %v599, %v594
    %vm601 = vcmask 392192
    %v602 = vsel %vm601, %v600, %v597
    %604 = vrot.lane.b32.xlu0 %v438, 32
    %v605 = vpop.permute.xlu0 %604
    %v608 = vrot.slane %v503, 2
    %609 = vrot.lane.b32.xlu0 %v608, 32
    %v610 = vpop.permute.xlu0 %609
    %612 = vrot.lane.b32.xlu0 %v608, 64
    %v613 = vpop.permute.xlu0 %612
    %615 = vrot.lane.b32.xlu0 %v438, 64
    %v616 = vpop.permute.xlu0 %615
    %v618 = vsel %vm139, %v605, %v610
    %v619 = vsel %vm320, %v618, %v613
    %v620 = vsel %vm601, %v619, %v616
    %621 = vrot.lane.b32.xlu0 %v503, 32
    %v622 = vpop.permute.xlu0 %621
    %v624 = vrot.slane %v438, 6
    %625 = vrot.lane.b32.xlu0 %v624, 32
    %v626 = vpop.permute.xlu0 %625
    %628 = vrot.lane.b32.xlu0 %v624, 64
    %v629 = vpop.permute.xlu0 %628
    %631 = vrot.lane.b32.xlu0 %v503, 64
    %v632 = vpop.permute.xlu0 %631
    %v634 = vsel %vm139, %v622, %v626
    %v635 = vsel %vm320, %v634, %v629
    %v636 = vsel %vm601, %v635, %v632
    %637 = vrot.lane.b32.xlu0 %v568, 32
    %v638 = vpop.permute.xlu0 %637
    %v640 = vrot.slane %v374, 2
    %641 = vrot.lane.b32.xlu0 %v640, 32
    %v642 = vpop.permute.xlu0 %641
    %644 = vrot.lane.b32.xlu0 %v640, 64
    %v645 = vpop.permute.xlu0 %644
    %647 = vrot.lane.b32.xlu0 %v568, 64
    %v648 = vpop.permute.xlu0 %647
    %v650 = vsel %vm139, %v638, %v642
    %v651 = vsel %vm320, %v650, %v645
    %v652 = vsel %vm601, %v651, %v648
    %v653 = vsel %vm279, %v602, %v620
    %v654 = vsel %vm67, %v653, %v636
    %v655 = vsel %vm282, %v654, %v652
    %v656 = vpack.c.bf16 %v655, %v655
    %v657 = vperm.slane %v583, 0
    %v666 = vunpack.c.l.b16 %v570
    %v667 = vunpack.c.l.b16 %v571
    %v668 = vunpack.c.l.b16 %v572
    %v669 = vunpack.c.l.b16 %v573
    %v670 = vunpack.c.l.b16 %v574
    %v671 = vunpack.c.l.b16 %v575
    %v672 = vunpack.c.l.b16 %v576
    %v673 = vunpack.c.l.b16 %v577
    %v674 = vpack.c.b16 %v667, %v666
    %v675 = vpack.c.b16 %v669, %v668
    %v676 = vpack.c.b16 %v671, %v670
    %v677 = vpack.c.b16 %v673, %v672
    %vm682 = vcmask 523264
    %v684 = vsel %vm682, %v656, 0
    %686 = vmatpush.bf16.msra.mxu0 0
    %687 = vmatpush.bf16.msra.mxu0 0
    %688 = vmatpush.bf16.msra.mxu0 0
    %689 = vmatpush.bf16.msra.mxu0 0
    %690 = vmatpush.bf16.msra.mxu0 %v677
    %691 = vmatpush.bf16.msra.mxu0 %v676
    %692 = vmatpush.bf16.msra.mxu0 %v675
    %693 = vmatpush.bf16.msra.mxu0 %v674
    %694 = vmatmul.bf16.gmra.mxu0 %v684
    %v695 = vpop.f32.mrf.mxu0
    %v696 = vadd.f32 %v657, %v695
    %v697 = vpop.f32.mrf.mxu0
    %698 = vdwg.mxu0
    %v703 = vunpack.c.l.b16 %v579
    %v704 = vunpack.c.l.b16 %v580
    %v705 = vunpack.c.l.b16 %v581
    %v706 = vunpack.c.l.b16 %v582
    %v707 = vpack.c.b16 %v704, %v703
    %v708 = vpack.c.b16 %v706, %v705
    %711 = vmatpush.bf16.msra.mxu0 0
    %712 = vmatpush.bf16.msra.mxu0 0
    %713 = vmatpush.bf16.msra.mxu0 0
    %714 = vmatpush.bf16.msra.mxu0 0
    %715 = vmatpush.bf16.msra.mxu0 0
    %716 = vmatpush.bf16.msra.mxu0 0
    %717 = vmatpush.bf16.msra.mxu0 %v708
    %718 = vmatpush.bf16.msra.mxu0 %v707
    %719 = vmatmul.bf16.gmra.mxu0 %v322
    %v720 = vpop.f32.mrf.mxu0
    %v721 = vadd.f32 0.0, %v720
    %v722 = vpop.f32.mrf.mxu0
    %723 = vdwg.mxu0
    %v724 = vadd.f32 %v696, %v721
    %v725 = vxor.u32 %v724, 2147483648
    %v726 = vmul.f32 %v725, 1.442695
    %v727 = vpow.pop %v726
    %v728 = vadd.f32 %v727, 1.0
    %v729 = vrcp.pop %v728
    %v730 = vmul.f32 %v728, %v729
    %v731 = vsub.f32 1.0, %v730
    %v732 = vmul.f32 %v729, %v731
    %v733 = vadd.f32 %v729, %v732
    %vm734 = vweird.f32 %v728
    %vm735 = vweird.f32 %v729
    %vm736 = vmor %vm734, %vm735
    %v737 = vsel %vm736, %v729, %v733
    %v738 = vand.u32 2147483647, %v728
    %vm739 = vcmp.eq.f32.partialorder %v738, 8.507059e+37
    %v740 = vand.u32 %v728, 2147483648
    %v741 = vor.u32 1.1754944e-38, %v740
    %v742 = vsel %vm739, %v741, %v737
    %v743 = vmul.f32 1.0, %v742
    %v744 = vtanh.pop %v724
    %v745 = vmul.f32 %v743, 0.0
    %747 = vrot.lane.b32.xlu0 %v744, 64
    %v748 = vpop.permute.xlu0 %747
    %v750 = vmul.f32 %v743, %v748
    %752 = vrot.lane.b32.xlu0 %v750, 32
    %v753 = vpop.permute.xlu0 %752
    %v755 = vadd.f32 %v745, %v753
    %v756 = vtanh.pop %v755
    %758 = vrot.lane.b32.xlu0 %v756, 64
    %v759 = vpop.permute.xlu0 %758
    %v761 = vmul.f32 %v743, %v759
    %v762 = vpack.c.bf16 %v761, %v761
    %764 = vrot.lane.b32.xlu0 %v762, 32
    %v765 = vpop.permute.xlu0 %764
    %v767 = vsel %vm320, %v765, 0
    %769 = vmatpush.bf16.msra.mxu0 0
    %770 = vmatpush.bf16.msra.mxu0 0
    %771 = vmatpush.bf16.msra.mxu0 0
    %772 = vmatpush.bf16.msra.mxu0 0
    %773 = vmatpush.bf16.msra.mxu0 0
    %774 = vmatpush.bf16.msra.mxu0 0
    %775 = vmatpush.bf16.msra.mxu0 %v708
    %776 = vmatpush.bf16.msra.mxu0 %v707
    %777 = vmatmul.bf16.gmra.mxu0 %v767
    %v778 = vpop.f32.mrf.mxu0
    %v779 = vadd.f32 0.0, %v778
    %v780 = vpop.f32.mrf.mxu0
    %781 = vdwg.mxu0
    %v783 = vrot.slane %v779, 6
    %v785 = vadd.f32 %v696, %v783
    %v786 = vxor.u32 %v785, 2147483648
    %v787 = vmul.f32 %v786, 1.442695
    %v788 = vpow.pop %v787
    %v789 = vadd.f32 %v788, 1.0
    %v790 = vrcp.pop %v789
    %v791 = vmul.f32 %v789, %v790
    %v792 = vsub.f32 1.0, %v791
    %v793 = vmul.f32 %v790, %v792
    %v794 = vadd.f32 %v790, %v793
    %vm795 = vweird.f32 %v789
    %vm796 = vweird.f32 %v790
    %vm797 = vmor %vm795, %vm796
    %v798 = vsel %vm797, %v790, %v794
    %v799 = vand.u32 2147483647, %v789
    %vm800 = vcmp.eq.f32.partialorder %v799, 8.507059e+37
    %v801 = vand.u32 %v789, 2147483648
    %v802 = vor.u32 1.1754944e-38, %v801
    %v803 = vsel %vm800, %v802, %v798
    %v804 = vmul.f32 1.0, %v803
    %v805 = vtanh.pop %v785
    %v807 = vrot.slane %v755, 6
    %v809 = vmul.f32 %v804, %v807
    %811 = vrot.lane.b32.xlu0 %v805, 64
    %v812 = vpop.permute.xlu0 %811
    %v814 = vmul.f32 %v804, %v812
    %816 = vrot.lane.b32.xlu0 %v814, 32
    %v817 = vpop.permute.xlu0 %816
    %v819 = vadd.f32 %v809, %v817
    %v820 = vtanh.pop %v819
    %822 = vrot.lane.b32.xlu0 %v820, 64
    %v823 = vpop.permute.xlu0 %822
    %v825 = vmul.f32 %v804, %v823
    %v826 = vpack.c.bf16 %v825, %v825
    %v828 = vrot.slane %v826, 1
    %829 = vrot.lane.b32.xlu0 %v828, 32
    %v830 = vpop.permute.xlu0 %829
    %v832 = vsel %vm320, %v830, 0
    %834 = vmatpush.bf16.msra.mxu0 0
    %835 = vmatpush.bf16.msra.mxu0 0
    %836 = vmatpush.bf16.msra.mxu0 0
    %837 = vmatpush.bf16.msra.mxu0 0
    %838 = vmatpush.bf16.msra.mxu0 0
    %839 = vmatpush.bf16.msra.mxu0 0
    %840 = vmatpush.bf16.msra.mxu0 %v708
    %841 = vmatpush.bf16.msra.mxu0 %v707
    %842 = vmatmul.bf16.gmra.mxu0 %v832
    %v843 = vpop.f32.mrf.mxu0
    %v844 = vadd.f32 0.0, %v843
    %v845 = vpop.f32.mrf.mxu0
    %846 = vdwg.mxu0
    %v848 = vrot.slane %v844, 4
    %v850 = vadd.f32 %v696, %v848
    %v851 = vxor.u32 %v850, 2147483648
    %v852 = vmul.f32 %v851, 1.442695
    %v853 = vpow.pop %v852
    %v854 = vadd.f32 %v853, 1.0
    %v855 = vrcp.pop %v854
    %v856 = vmul.f32 %v854, %v855
    %v857 = vsub.f32 1.0, %v856
    %v858 = vmul.f32 %v855, %v857
    %v859 = vadd.f32 %v855, %v858
    %vm860 = vweird.f32 %v854
    %vm861 = vweird.f32 %v855
    %vm862 = vmor %vm860, %vm861
    %v863 = vsel %vm862, %v855, %v859
    %v864 = vand.u32 2147483647, %v854
    %vm865 = vcmp.eq.f32.partialorder %v864, 8.507059e+37
    %v866 = vand.u32 %v854, 2147483648
    %v867 = vor.u32 1.1754944e-38, %v866
    %v868 = vsel %vm865, %v867, %v863
    %v869 = vmul.f32 1.0, %v868
    %v870 = vtanh.pop %v850
    %v872 = vrot.slane %v819, 6
    %v874 = vmul.f32 %v869, %v872
    %876 = vrot.lane.b32.xlu0 %v870, 64
    %v877 = vpop.permute.xlu0 %876
    %v879 = vmul.f32 %v869, %v877
    %881 = vrot.lane.b32.xlu0 %v879, 32
    %v882 = vpop.permute.xlu0 %881
    %v884 = vadd.f32 %v874, %v882
    %v885 = vtanh.pop %v884
    %887 = vrot.lane.b32.xlu0 %v885, 64
    %v888 = vpop.permute.xlu0 %887
    %v890 = vmul.f32 %v869, %v888
    %v891 = vpack.c.bf16 %v890, %v890
    %v893 = vrot.slane %v891, 2
    %894 = vrot.lane.b32.xlu0 %v893, 32
    %v895 = vpop.permute.xlu0 %894
    %v897 = vsel %vm320, %v895, 0
    %899 = vmatpush.bf16.msra.mxu0 0
    %900 = vmatpush.bf16.msra.mxu0 0
    %901 = vmatpush.bf16.msra.mxu0 0
    %902 = vmatpush.bf16.msra.mxu0 0
    %903 = vmatpush.bf16.msra.mxu0 0
    %904 = vmatpush.bf16.msra.mxu0 0
    %905 = vmatpush.bf16.msra.mxu0 %v708
    %906 = vmatpush.bf16.msra.mxu0 %v707
    %907 = vmatmul.bf16.gmra.mxu0 %v897
    %v908 = vpop.f32.mrf.mxu0
    %v909 = vadd.f32 0.0, %v908
    %v910 = vpop.f32.mrf.mxu0
    %911 = vdwg.mxu0
    %v913 = vrot.slane %v909, 2
    %v915 = vadd.f32 %v696, %v913
    %v916 = vxor.u32 %v915, 2147483648
    %v917 = vmul.f32 %v916, 1.442695
    %v918 = vpow.pop %v917
    %v919 = vadd.f32 %v918, 1.0
    %v920 = vrcp.pop %v919
    %v921 = vmul.f32 %v919, %v920
    %v922 = vsub.f32 1.0, %v921
    %v923 = vmul.f32 %v920, %v922
    %v924 = vadd.f32 %v920, %v923
    %vm925 = vweird.f32 %v919
    %vm926 = vweird.f32 %v920
    %vm927 = vmor %vm925, %vm926
    %v928 = vsel %vm927, %v920, %v924
    %v929 = vand.u32 2147483647, %v919
    %vm930 = vcmp.eq.f32.partialorder %v929, 8.507059e+37
    %v931 = vand.u32 %v919, 2147483648
    %v932 = vor.u32 1.1754944e-38, %v931
    %v933 = vsel %vm930, %v932, %v928
    %v934 = vmul.f32 1.0, %v933
    %v935 = vtanh.pop %v915
    %v937 = vrot.slane %v884, 6
    %v939 = vmul.f32 %v934, %v937
    %941 = vrot.lane.b32.xlu0 %v935, 64
    %v942 = vpop.permute.xlu0 %941
    %v944 = vmul.f32 %v934, %v942
    %946 = vrot.lane.b32.xlu0 %v944, 32
    %v947 = vpop.permute.xlu0 %946
    %v949 = vadd.f32 %v939, %v947
    %v950 = vtanh.pop %v949
    %952 = vrot.lane.b32.xlu0 %v950, 64
    %v953 = vpop.permute.xlu0 %952
    %v955 = vmul.f32 %v934, %v953
    %s956 = scalar_lea.vmem %s3, 64
    %v957 = vld [vmem:[%s956] sm:$0xf]
    %v958 = vld [vmem:[%s956 + $0x4] sm:$0xf]
    %v959 = vld [vmem:[%s956 + $0x8] sm:$0xf]
    %v960 = vld [vmem:[%s956 + $0xc] sm:$0xf]
    %v961 = vld [vmem:[%s956 + $0x10] sm:$0xf]
    %v962 = vld [vmem:[%s956 + $0x14] sm:$0xf]
    %v963 = vld [vmem:[%s956 + $0x18] sm:$0xf]
    %v964 = vld [vmem:[%s956 + $0x1c] sm:$0xf]
    %s965 = scalar_lea.vmem %s4, 32
    %v966 = vld [vmem:[%s965] sm:$0xf]
    %v967 = vld [vmem:[%s965 + $0x4] sm:$0xf]
    %v968 = vld [vmem:[%s965 + $0x8] sm:$0xf]
    %v969 = vld [vmem:[%s965 + $0xc] sm:$0xf]
    %v970 = vld [vmem:[%s5 + $0x2] sm:$0x1]
    %972 = vrot.lane.b32.xlu0 %v761, 32
    %v973 = vpop.permute.xlu0 %972
    %v976 = vrot.slane %v955, 6
    %977 = vrot.lane.b32.xlu0 %v976, 32
    %v978 = vpop.permute.xlu0 %977
    %980 = vrot.lane.b32.xlu0 %v976, 64
    %v981 = vpop.permute.xlu0 %980
    %983 = vrot.lane.b32.xlu0 %v761, 64
    %v984 = vpop.permute.xlu0 %983
    %v986 = vsel %vm139, %v973, %v978
    %v987 = vsel %vm320, %v986, %v981
    %v988 = vsel %vm601, %v987, %v984
    %990 = vrot.lane.b32.xlu0 %v825, 32
    %v991 = vpop.permute.xlu0 %990
    %v994 = vrot.slane %v890, 2
    %995 = vrot.lane.b32.xlu0 %v994, 32
    %v996 = vpop.permute.xlu0 %995
    %998 = vrot.lane.b32.xlu0 %v994, 64
    %v999 = vpop.permute.xlu0 %998
    %1001 = vrot.lane.b32.xlu0 %v825, 64
    %v1002 = vpop.permute.xlu0 %1001
    %v1004 = vsel %vm139, %v991, %v996
    %v1005 = vsel %vm320, %v1004, %v999
    %v1006 = vsel %vm601, %v1005, %v1002
    %1007 = vrot.lane.b32.xlu0 %v890, 32
    %v1008 = vpop.permute.xlu0 %1007
    %v1010 = vrot.slane %v825, 6
    %1011 = vrot.lane.b32.xlu0 %v1010, 32
    %v1012 = vpop.permute.xlu0 %1011
    %1014 = vrot.lane.b32.xlu0 %v1010, 64
    %v1015 = vpop.permute.xlu0 %1014
    %1017 = vrot.lane.b32.xlu0 %v890, 64
    %v1018 = vpop.permute.xlu0 %1017
    %v1020 = vsel %vm139, %v1008, %v1012
    %v1021 = vsel %vm320, %v1020, %v1015
    %v1022 = vsel %vm601, %v1021, %v1018
    %1023 = vrot.lane.b32.xlu0 %v955, 32
    %v1024 = vpop.permute.xlu0 %1023
    %v1026 = vrot.slane %v761, 2
    %1027 = vrot.lane.b32.xlu0 %v1026, 32
    %v1028 = vpop.permute.xlu0 %1027
    %1030 = vrot.lane.b32.xlu0 %v1026, 64
    %v1031 = vpop.permute.xlu0 %1030
    %1033 = vrot.lane.b32.xlu0 %v955, 64
    %v1034 = vpop.permute.xlu0 %1033
    %v1036 = vsel %vm139, %v1024, %v1028
    %v1037 = vsel %vm320, %v1036, %v1031
    %v1038 = vsel %vm601, %v1037, %v1034
    %v1039 = vsel %vm279, %v988, %v1006
    %v1040 = vsel %vm67, %v1039, %v1022
    %v1041 = vsel %vm282, %v1040, %v1038
    %v1042 = vpack.c.bf16 %v1041, %v1041
    %v1043 = vperm.slane %v970, 0
    %v1052 = vunpack.c.l.b16 %v957
    %v1053 = vunpack.c.l.b16 %v958
    %v1054 = vunpack.c.l.b16 %v959
    %v1055 = vunpack.c.l.b16 %v960
    %v1056 = vunpack.c.l.b16 %v961
    %v1057 = vunpack.c.l.b16 %v962
    %v1058 = vunpack.c.l.b16 %v963
    %v1059 = vunpack.c.l.b16 %v964
    %v1060 = vpack.c.b16 %v1053, %v1052
    %v1061 = vpack.c.b16 %v1055, %v1054
    %v1062 = vpack.c.b16 %v1057, %v1056
    %v1063 = vpack.c.b16 %v1059, %v1058
    %v1069 = vsel %vm682, %v1042, 0
    %1071 = vmatpush.bf16.msra.mxu0 0
    %1072 = vmatpush.bf16.msra.mxu0 0
    %1073 = vmatpush.bf16.msra.mxu0 0
    %1074 = vmatpush.bf16.msra.mxu0 0
    %1075 = vmatpush.bf16.msra.mxu0 %v1063
    %1076 = vmatpush.bf16.msra.mxu0 %v1062
    %1077 = vmatpush.bf16.msra.mxu0 %v1061
    %1078 = vmatpush.bf16.msra.mxu0 %v1060
    %1079 = vmatmul.bf16.gmra.mxu0 %v1069
    %v1080 = vpop.f32.mrf.mxu0
    %v1081 = vadd.f32 %v1043, %v1080
    %v1082 = vpop.f32.mrf.mxu0
    %1083 = vdwg.mxu0
    %v1088 = vunpack.c.l.b16 %v966
    %v1089 = vunpack.c.l.b16 %v967
    %v1090 = vunpack.c.l.b16 %v968
    %v1091 = vunpack.c.l.b16 %v969
    %v1092 = vpack.c.b16 %v1089, %v1088
    %v1093 = vpack.c.b16 %v1091, %v1090
    %1096 = vmatpush.bf16.msra.mxu0 0
    %1097 = vmatpush.bf16.msra.mxu0 0
    %1098 = vmatpush.bf16.msra.mxu0 0
    %1099 = vmatpush.bf16.msra.mxu0 0
    %1100 = vmatpush.bf16.msra.mxu0 0
    %1101 = vmatpush.bf16.msra.mxu0 0
    %1102 = vmatpush.bf16.msra.mxu0 %v1093
    %1103 = vmatpush.bf16.msra.mxu0 %v1092
    %1104 = vmatmul.bf16.gmra.mxu0 %v322
    %v1105 = vpop.f32.mrf.mxu0
    %v1106 = vadd.f32 0.0, %v1105
    %v1107 = vpop.f32.mrf.mxu0
    %1108 = vdwg.mxu0
    %v1109 = vadd.f32 %v1081, %v1106
    %v1110 = vxor.u32 %v1109, 2147483648
    %v1111 = vmul.f32 %v1110, 1.442695
    %v1112 = vpow.pop %v1111
    %v1113 = vadd.f32 %v1112, 1.0
    %v1114 = vrcp.pop %v1113
    %v1115 = vmul.f32 %v1113, %v1114
    %v1116 = vsub.f32 1.0, %v1115
    %v1117 = vmul.f32 %v1114, %v1116
    %v1118 = vadd.f32 %v1114, %v1117
    %vm1119 = vweird.f32 %v1113
    %vm1120 = vweird.f32 %v1114
    %vm1121 = vmor %vm1119, %vm1120
    %v1122 = vsel %vm1121, %v1114, %v1118
    %v1123 = vand.u32 2147483647, %v1113
    %vm1124 = vcmp.eq.f32.partialorder %v1123, 8.507059e+37
    %v1125 = vand.u32 %v1113, 2147483648
    %v1126 = vor.u32 1.1754944e-38, %v1125
    %v1127 = vsel %vm1124, %v1126, %v1122
    %v1128 = vmul.f32 1.0, %v1127
    %v1129 = vtanh.pop %v1109
    %v1130 = vmul.f32 %v1128, 0.0
    %1132 = vrot.lane.b32.xlu0 %v1129, 64
    %v1133 = vpop.permute.xlu0 %1132
    %v1135 = vmul.f32 %v1128, %v1133
    %1137 = vrot.lane.b32.xlu0 %v1135, 32
    %v1138 = vpop.permute.xlu0 %1137
    %v1140 = vadd.f32 %v1130, %v1138
    %v1141 = vtanh.pop %v1140
    %1143 = vrot.lane.b32.xlu0 %v1141, 64
    %v1144 = vpop.permute.xlu0 %1143
    %v1146 = vmul.f32 %v1128, %v1144
    %v1147 = vpack.c.bf16 %v1146, %v1146
    %1149 = vrot.lane.b32.xlu0 %v1147, 32
    %v1150 = vpop.permute.xlu0 %1149
    %v1152 = vsel %vm320, %v1150, 0
    %1154 = vmatpush.bf16.msra.mxu0 0
    %1155 = vmatpush.bf16.msra.mxu0 0
    %1156 = vmatpush.bf16.msra.mxu0 0
    %1157 = vmatpush.bf16.msra.mxu0 0
    %1158 = vmatpush.bf16.msra.mxu0 0
    %1159 = vmatpush.bf16.msra.mxu0 0
    %1160 = vmatpush.bf16.msra.mxu0 %v1093
    %1161 = vmatpush.bf16.msra.mxu0 %v1092
    %1162 = vmatmul.bf16.gmra.mxu0 %v1152
    %v1163 = vpop.f32.mrf.mxu0
    %v1164 = vadd.f32 0.0, %v1163
    %v1165 = vpop.f32.mrf.mxu0
    %1166 = vdwg.mxu0
    %v1168 = vrot.slane %v1164, 6
    %v1170 = vadd.f32 %v1081, %v1168
    %v1171 = vxor.u32 %v1170, 2147483648
    %v1172 = vmul.f32 %v1171, 1.442695
    %v1173 = vpow.pop %v1172
    %v1174 = vadd.f32 %v1173, 1.0
    %v1175 = vrcp.pop %v1174
    %v1176 = vmul.f32 %v1174, %v1175
    %v1177 = vsub.f32 1.0, %v1176
    %v1178 = vmul.f32 %v1175, %v1177
    %v1179 = vadd.f32 %v1175, %v1178
    %vm1180 = vweird.f32 %v1174
    %vm1181 = vweird.f32 %v1175
    %vm1182 = vmor %vm1180, %vm1181
    %v1183 = vsel %vm1182, %v1175, %v1179
    %v1184 = vand.u32 2147483647, %v1174
    %vm1185 = vcmp.eq.f32.partialorder %v1184, 8.507059e+37
    %v1186 = vand.u32 %v1174, 2147483648
    %v1187 = vor.u32 1.1754944e-38, %v1186
    %v1188 = vsel %vm1185, %v1187, %v1183
    %v1189 = vmul.f32 1.0, %v1188
    %v1190 = vtanh.pop %v1170
    %v1192 = vrot.slane %v1140, 6
    %v1194 = vmul.f32 %v1189, %v1192
    %1196 = vrot.lane.b32.xlu0 %v1190, 64
    %v1197 = vpop.permute.xlu0 %1196
    %v1199 = vmul.f32 %v1189, %v1197
    %1201 = vrot.lane.b32.xlu0 %v1199, 32
    %v1202 = vpop.permute.xlu0 %1201
    %v1204 = vadd.f32 %v1194, %v1202
    %v1205 = vtanh.pop %v1204
    %1207 = vrot.lane.b32.xlu0 %v1205, 64
    %v1208 = vpop.permute.xlu0 %1207
    %v1210 = vmul.f32 %v1189, %v1208
    %v1211 = vpack.c.bf16 %v1210, %v1210
    %v1213 = vrot.slane %v1211, 1
    %1214 = vrot.lane.b32.xlu0 %v1213, 32
    %v1215 = vpop.permute.xlu0 %1214
    %v1217 = vsel %vm320, %v1215, 0
    %1219 = vmatpush.bf16.msra.mxu0 0
    %1220 = vmatpush.bf16.msra.mxu0 0
    %1221 = vmatpush.bf16.msra.mxu0 0
    %1222 = vmatpush.bf16.msra.mxu0 0
    %1223 = vmatpush.bf16.msra.mxu0 0
    %1224 = vmatpush.bf16.msra.mxu0 0
    %1225 = vmatpush.bf16.msra.mxu0 %v1093
    %1226 = vmatpush.bf16.msra.mxu0 %v1092
    %1227 = vmatmul.bf16.gmra.mxu0 %v1217
    %v1228 = vpop.f32.mrf.mxu0
    %v1229 = vadd.f32 0.0, %v1228
    %v1230 = vpop.f32.mrf.mxu0
    %1231 = vdwg.mxu0
    %v1233 = vrot.slane %v1229, 4
    %v1235 = vadd.f32 %v1081, %v1233
    %v1236 = vxor.u32 %v1235, 2147483648
    %v1237 = vmul.f32 %v1236, 1.442695
    %v1238 = vpow.pop %v1237
    %v1239 = vadd.f32 %v1238, 1.0
    %v1240 = vrcp.pop %v1239
    %v1241 = vmul.f32 %v1239, %v1240
    %v1242 = vsub.f32 1.0, %v1241
    %v1243 = vmul.f32 %v1240, %v1242
    %v1244 = vadd.f32 %v1240, %v1243
    %vm1245 = vweird.f32 %v1239
    %vm1246 = vweird.f32 %v1240
    %vm1247 = vmor %vm1245, %vm1246
    %v1248 = vsel %vm1247, %v1240, %v1244
    %v1249 = vand.u32 2147483647, %v1239
    %vm1250 = vcmp.eq.f32.partialorder %v1249, 8.507059e+37
    %v1251 = vand.u32 %v1239, 2147483648
    %v1252 = vor.u32 1.1754944e-38, %v1251
    %v1253 = vsel %vm1250, %v1252, %v1248
    %v1254 = vmul.f32 1.0, %v1253
    %v1255 = vtanh.pop %v1235
    %v1257 = vrot.slane %v1204, 6
    %v1259 = vmul.f32 %v1254, %v1257
    %1261 = vrot.lane.b32.xlu0 %v1255, 64
    %v1262 = vpop.permute.xlu0 %1261
    %v1264 = vmul.f32 %v1254, %v1262
    %1266 = vrot.lane.b32.xlu0 %v1264, 32
    %v1267 = vpop.permute.xlu0 %1266
    %v1269 = vadd.f32 %v1259, %v1267
    %v1270 = vtanh.pop %v1269
    %1272 = vrot.lane.b32.xlu0 %v1270, 64
    %v1273 = vpop.permute.xlu0 %1272
    %v1275 = vmul.f32 %v1254, %v1273
    %v1276 = vpack.c.bf16 %v1275, %v1275
    %v1278 = vrot.slane %v1276, 2
    %1279 = vrot.lane.b32.xlu0 %v1278, 32
    %v1280 = vpop.permute.xlu0 %1279
    %v1282 = vsel %vm320, %v1280, 0
    %1284 = vmatpush.bf16.msra.mxu0 0
    %1285 = vmatpush.bf16.msra.mxu0 0
    %1286 = vmatpush.bf16.msra.mxu0 0
    %1287 = vmatpush.bf16.msra.mxu0 0
    %1288 = vmatpush.bf16.msra.mxu0 0
    %1289 = vmatpush.bf16.msra.mxu0 0
    %1290 = vmatpush.bf16.msra.mxu0 %v1093
    %1291 = vmatpush.bf16.msra.mxu0 %v1092
    %1292 = vmatmul.bf16.gmra.mxu0 %v1282
    %v1293 = vpop.f32.mrf.mxu0
    %v1294 = vadd.f32 0.0, %v1293
    %v1295 = vpop.f32.mrf.mxu0
    %1296 = vdwg.mxu0
    %v1298 = vrot.slane %v1294, 2
    %v1300 = vadd.f32 %v1081, %v1298
    %v1301 = vxor.u32 %v1300, 2147483648
    %v1302 = vmul.f32 %v1301, 1.442695
    %v1303 = vpow.pop %v1302
    %v1304 = vadd.f32 %v1303, 1.0
    %v1305 = vrcp.pop %v1304
    %v1306 = vmul.f32 %v1304, %v1305
    %v1307 = vsub.f32 1.0, %v1306
    %v1308 = vmul.f32 %v1305, %v1307
    %v1309 = vadd.f32 %v1305, %v1308
    %vm1310 = vweird.f32 %v1304
    %vm1311 = vweird.f32 %v1305
    %vm1312 = vmor %vm1310, %vm1311
    %v1313 = vsel %vm1312, %v1305, %v1309
    %v1314 = vand.u32 2147483647, %v1304
    %vm1315 = vcmp.eq.f32.partialorder %v1314, 8.507059e+37
    %v1316 = vand.u32 %v1304, 2147483648
    %v1317 = vor.u32 1.1754944e-38, %v1316
    %v1318 = vsel %vm1315, %v1317, %v1313
    %v1319 = vmul.f32 1.0, %v1318
    %v1320 = vtanh.pop %v1300
    %v1322 = vrot.slane %v1269, 6
    %v1324 = vmul.f32 %v1319, %v1322
    %1326 = vrot.lane.b32.xlu0 %v1320, 64
    %v1327 = vpop.permute.xlu0 %1326
    %v1329 = vmul.f32 %v1319, %v1327
    %1331 = vrot.lane.b32.xlu0 %v1329, 32
    %v1332 = vpop.permute.xlu0 %1331
    %v1334 = vadd.f32 %v1324, %v1332
    %v1335 = vtanh.pop %v1334
    %1337 = vrot.lane.b32.xlu0 %v1335, 64
    %v1338 = vpop.permute.xlu0 %1337
    %v1340 = vmul.f32 %v1319, %v1338
    %v1341 = vpack.c.bf16 %v1340, %v1340
    %v1342 = vld [vmem:[%s6] sm:$0xf]
    %v1343 = vld [vmem:[%s6 + $0x4] sm:$0xf]
    %v1344 = vld [vmem:[%s6 + $0x8] sm:$0xf]
    %v1345 = vld [vmem:[%s6 + $0xc] sm:$0xf]
    %v1346 = vld [vmem:[%s5 + $0x3] sm:$0x1]
    %v1347 = vperm.slane %v1346, 0
    %v1349 = vrot.slane %v1341, 3
    %1350 = vrot.lane.b32.xlu0 %v1349, 32
    %v1351 = vpop.permute.xlu0 %1350
    %v1356 = vunpack.c.l.b16 %v1342
    %v1357 = vunpack.c.l.b16 %v1343
    %v1358 = vunpack.c.l.b16 %v1344
    %v1359 = vunpack.c.l.b16 %v1345
    %v1360 = vpack.c.b16 %v1357, %v1356
    %v1361 = vpack.c.b16 %v1359, %v1358
    %v1365 = vsel %vm320, %v1351, 0
    %1367 = vmatpush.bf16.msra.mxu0 0
    %1368 = vmatpush.bf16.msra.mxu0 0
    %1369 = vmatpush.bf16.msra.mxu0 0
    %1370 = vmatpush.bf16.msra.mxu0 0
    %1371 = vmatpush.bf16.msra.mxu0 0
    %1372 = vmatpush.bf16.msra.mxu0 0
    %1373 = vmatpush.bf16.msra.mxu0 %v1361
    %1374 = vmatpush.bf16.msra.mxu0 %v1360
    %1375 = vmatmul.bf16.gmra.mxu0 %v1365
    %v1376 = vpop.f32.mrf.mxu0
    %v1377 = vadd.f32 %v1347, %v1376
    %v1378 = vpop.f32.mrf.mxu0
    %1379 = vdwg.mxu0
    %1380 = vst [vmem:[#allocation2] sm:$0x3] %v1377
    // Predicated region
    $region30: #{net_project_forward.1} parent=1 // pred_check
      _
    $region31: #{net_project_forward.1} parent=1 // pred_check_branch
      %1382 = sbr.rel (0) target = $region33
    $region32: #{net_project_forward.1} parent=1 // pred_region
      %1384 = vsyncadd [#allocation3], 0
      %s1386 = sshll.u32 [#allocation2], 4
      %s1387 = int_to_ptr.vmem [resolvable:$true] %s1386
      %s1388 = sshll.u32 %s7, 4
      %s1389 = int_to_ptr.hbm [resolvable:$true] %s1388
      %1391 = dma.vmem_to_hbm [thread:$0]  %s1387, 32, %s1389, [#allocation3]
    $region33: #{net_project_forward.1} parent=1 // pred_fallthru
      _
    // Predicated region
    $region34: #{net_project_forward.1} parent=1 // pred_check
      _
    $region35: #{net_project_forward.1} parent=1 // pred_check_branch
      %1393 = sbr.rel (0) target = $region37
    $region36: #{net_project_forward.1} parent=1 // pred_region
      %1395 = dma.done [#allocation3], 32
    $region37: #{net_project_forward.1} parent=1 // pred_fallthru
      _
    %1396 = vsyncpa [#allocation3], 1

</llo_original>
